<compile_context>
chip_gen: v5e
topology: v5e:2x2
jax: 0.10.0
libtpu: 0.0.40
codegen_flags: <defaults>
</compile_context>

<pallas_src>
import numpy as np
import jax
import jax.numpy as jnp
from jax import lax
from jax.experimental import pallas as pl
from jax.experimental.pallas import tpu as pltpu


def _make_kernel(h_dim, out_dim, num_heads, act_clamp):
    depth = h_dim // num_heads
    attn_scale = float(depth) ** -0.5

    def kernel(x_ref, wlat_ref, affwt_ref, affb_ref, qkvt_ref, qkvsq_ref,
               wut_ref, wusq_ref, noise_ref, bias_ref, out_ref, attn_scr):
        BT, L, H = x_ref.shape
        n_rows = BT * L

        x = x_ref[...]                       # [BT, L, H]
        wlat = wlat_ref[...]                 # [BT, w_dim]

        # affine1 (FullyConnectedLayer, linear): styles = w @ (weight*gain).T + bias
        styles = jnp.dot(wlat, affwt_ref[...],
                         preferred_element_type=jnp.float32) + affb_ref[...]
        s1 = styles[:, :H]                   # [BT, H]
        s2 = styles[:, H:]                   # [BT, H]

        # Demodulation coefficients, batched on the MXU:
        #   sum_in (W[j,in] * s[in])^2 == (s*s) @ (W*W).T
        qkv_d = lax.rsqrt(jnp.dot(s1 * s1, qkvsq_ref[...],
                                  preferred_element_type=jnp.float32) + 1e-8)   # [BT, 3H]
        wu_d = lax.rsqrt(jnp.dot(s2 * s2, wusq_ref[...],
                                 preferred_element_type=jnp.float32) + 1e-8)    # [BT, 2*out]
        w_d = wu_d[:, :out_dim]
        u_d = wu_d[:, out_dim:]

        # Per-feature scale for the fused qkv projection:
        #   q: q_d * attn_scale (softmax scale folded in), k: k_d, v: v_d * s2
        qkv_scale = qkv_d * jnp.concatenate(
            [jnp.full_like(s1, attn_scale), jnp.ones_like(s1), s2], axis=-1)    # [BT, 3H]

        # modulate + InstanceNorm1d(seq_length) == per-(b, seq) norm over hidden dim
        xm = x * s1[:, None, :]
        mu = jnp.mean(xm, axis=-1, keepdims=True)
        var = jnp.mean(jnp.square(xm - mu), axis=-1, keepdims=True)
        xn = (xm - mu) * lax.rsqrt(var + 1e-5)                                  # [BT, L, H]

        # Fused q/k/v projection for the whole batch tile (pre-transposed weight).
        qkv = jnp.dot(xn.reshape(n_rows, H), qkvt_ref[...],
                      preferred_element_type=jnp.float32)                       # [BT*L, 3H]
        qkv = qkv.reshape(BT, L, 3 * H) * qkv_scale[:, None, :]

        skip = qkv[:, :, 2 * H:]             # [BT, L, H]  (demodulated v * s2)

        # Multi-head attention per batch element (proj_weight is None in this config).
        for b in range(BT):
            for h in range(num_heads):
                lo = h * depth
                qh = qkv[b, :, lo:lo + depth]
                kh = qkv[b, :, H + lo:H + lo + depth]
                vh = qkv[b, :, 2 * H + lo:2 * H + lo + depth]
                s = lax.dot_general(qh, kh, (((1,), (1,)), ((), ())),
                                    preferred_element_type=jnp.float32)         # [L, L]
                s = s - jnp.max(s, axis=-1, keepdims=True)
                p = jnp.exp(s)
                p = p * pl.reciprocal(jnp.sum(p, axis=-1, keepdims=True), approx=True)
                attn_scr[b, :, lo:lo + depth] = jnp.dot(
                    p, vh, preferred_element_type=jnp.float32)

        # Fused output projection: one dot covers both the W path (attention output)
        # and the U path (skip). Top rows x left half = attn@ww.T, bottom rows x
        # right half = skip@uw.T; the unwanted cross blocks are free MXU padding.
        stacked = jnp.concatenate(
            [attn_scr[...].reshape(n_rows, H), skip.reshape(n_rows, H)], axis=0)
        y = jnp.dot(stacked, wut_ref[...],
                    preferred_element_type=jnp.float32)                         # [2n, 2*out]
        xo = y[:n_rows, :out_dim].reshape(BT, L, out_dim) * w_d[:, None, :]
        sk = y[n_rows:, out_dim:].reshape(BT, L, out_dim) * u_d[:, None, :]
        res = xo + sk

        # noise ('const' mode: noise_const * noise_strength, precomputed host-side)
        res = res + noise_ref[...][None, :, :]          # [1, L, 1] broadcast
        res = res + bias_ref[...][None, :, :]           # [1, 1, out] broadcast
        res = jnp.where(res >= 0.0, res, 0.2 * res)     # leaky_relu(0.2)
        if act_clamp is not None:
            res = jnp.clip(res, -act_clamp, act_clamp)
        out_ref[...] = res.astype(out_ref.dtype)

    return kernel


def encoder_layer_forward(x, wlat, params, num_heads, act_clamp, batch_tiles=None):
    B, L, H = x.shape
    out_dim = params["w_weight"].shape[0]
    w_dim = wlat.shape[-1]

    if batch_tiles is None:
        # Whole batch per grid step when B is tiny (the ~0.35us per-step pipeline
        # overhead would dominate); two parallel batch tiles for larger even B so
        # both v7x TensorCores get work (no-op on v5e/v6e).
        batch_tiles = 2 if (B >= 4 and B % 2 == 0) else 1
    assert B % batch_tiles == 0
    bt = B // batch_tiles

    kernel = _make_kernel(H, out_dim, num_heads, act_clamp)

    # Host-side prep (done once, outside the kernel):
    #   affine weight pre-scaled by weight_gain and pre-transposed; q/k/v and w/u
    #   concatenated + pre-transposed (lane-dense matmuls, no in-kernel transposes);
    #   elementwise squares for the demodulation-coefficient matmuls.
    affw_t = (params["affine_weight"] * np.float32(1.0 / np.sqrt(w_dim))).T     # [w_dim, 2H]
    affb = params["affine_bias"][None, :]                                        # [1, 2H]
    qkv_t = jnp.concatenate([params["q_weight"], params["k_weight"],
                             params["v_weight"]], axis=0).T                      # [H, 3H]
    qkv_sq_t = qkv_t * qkv_t
    wu_t = jnp.concatenate([params["w_weight"], params["u_weight"]], axis=0).T   # [H, 2*out]
    wu_sq_t = wu_t * wu_t
    noise = params["noise_const"] * params["noise_strength"]                     # [L, 1]
    bias = params["bias"][None, :]                                               # [1, out]
    # NOTE: on v5e/v6e at larger H/L, cast x / qkv_t / wu_t to bf16 here (keeping
    # preferred_element_type=float32 in the kernel) for MXU throughput.

    return pl.pallas_call(
        kernel,
        out_shape=jax.ShapeDtypeStruct((B, L, out_dim), x.dtype),
        grid_spec=pltpu.PrefetchScalarGridSpec(
            num_scalar_prefetch=0,
            grid=(batch_tiles,),
            in_specs=[
                pl.BlockSpec((bt, L, H), lambda i: (i, 0, 0)),        # x
                pl.BlockSpec((bt, w_dim), lambda i: (i, 0)),          # latent w
                pl.BlockSpec((w_dim, 2 * H), lambda i: (0, 0)),       # affine weight^T (scaled)
                pl.BlockSpec((1, 2 * H), lambda i: (0, 0)),           # affine bias
                pl.BlockSpec((H, 3 * H), lambda i: (0, 0)),           # [q|k|v]^T
                pl.BlockSpec((H, 3 * H), lambda i: (0, 0)),           # ([q|k|v]^T)^2
                pl.BlockSpec((H, 2 * out_dim), lambda i: (0, 0)),     # [w|u]^T
                pl.BlockSpec((H, 2 * out_dim), lambda i: (0, 0)),     # ([w|u]^T)^2
                pl.BlockSpec((L, 1), lambda i: (0, 0)),               # noise (const)
                pl.BlockSpec((1, out_dim), lambda i: (0, 0)),         # bias
            ],
            out_specs=pl.BlockSpec((bt, L, out_dim), lambda i: (i, 0, 0)),
            scratch_shapes=[pltpu.VMEM((bt, L, H), jnp.float32)],
        ),
        compiler_params=pltpu.CompilerParams(dimension_semantics=("parallel",)),
    )(x, wlat, affw_t, affb, qkv_t, qkv_sq_t, wu_t, wu_sq_t, noise, bias)


def reference_forward(x, wlat, params, num_heads, act_clamp):
    """Pure-JAX mirror of the PyTorch forward, for verification."""
    B, L, H = x.shape
    wdim = wlat.shape[-1]
    depth = H // num_heads
    scale = float(depth) ** -0.5
    affw = params["affine_weight"] * np.float32(1.0 / np.sqrt(wdim))
    styles = wlat @ affw.T + params["affine_bias"]
    s1 = styles[:, :H][:, None, :]
    s2 = styles[:, H:][:, None, :]
    xm = x * s1
    mu = xm.mean(-1, keepdims=True)
    var = ((xm - mu) ** 2).mean(-1, keepdims=True)
    xn = (xm - mu) / jnp.sqrt(var + 1e-5)
    qw, kw, vw = params["q_weight"], params["k_weight"], params["v_weight"]
    ww, uw = params["w_weight"], params["u_weight"]

    def dco(wm, s):
        m = wm[None] * s
        return jax.lax.rsqrt((m ** 2).sum(-1) + 1e-8)

    q_d, k_d, v_d = dco(qw, s1), dco(kw, s1), dco(vw, s1)
    w_d, u_d = dco(ww, s2), dco(uw, s2)
    q_value = (xn @ qw.T) * q_d[:, None, :]
    k_value = (xn @ kw.T) * k_d[:, None, :]
    v_value = (xn @ vw.T) * v_d[:, None, :] * s2
    skip = v_value
    qh = q_value.reshape(B, L, num_heads, depth).transpose(0, 2, 1, 3)
    kh = k_value.reshape(B, L, num_heads, depth).transpose(0, 2, 1, 3)
    vh = v_value.reshape(B, L, num_heads, depth).transpose(0, 2, 1, 3)
    attn = jnp.einsum('bhqd,bhkd->bhqk', qh, kh) * scale
    p = jax.nn.softmax(attn, axis=-1)
    o = jnp.einsum('bhqk,bhkd->bhqd', p, vh).transpose(0, 2, 1, 3).reshape(B, L, H)
    xo = (o @ ww.T) * w_d[:, None, :] + (skip @ uw.T) * u_d[:, None, :]
    xo = xo + (params["noise_const"] * params["noise_strength"])[None]
    xo = xo + params["bias"]
    xo = jnp.where(xo >= 0.0, xo, 0.2 * xo)
    xo = jnp.clip(xo, -act_clamp, act_clamp)
    return xo


if __name__ == "__main__":
    # Small config consistent with the module: h_dim=32, depth=8 -> num_heads=4
    B, L, H, WDIM, OUT = 2, 16, 32, 32, 32
    depth_cfg, minimum_head = 8, 1
    num_heads = max(minimum_head, H // depth_cfg)
    conv_clamp, gain = 256.0, 1.0
    act_clamp = conv_clamp * gain

    key = jax.random.PRNGKey(0)
    ks = jax.random.split(key, 10)
    lim = 1.0 / np.sqrt(H)
    params = {
        "affine_weight": jax.random.normal(ks[0], (2 * H, WDIM), jnp.float32),
        "affine_bias": jnp.ones((2 * H,), jnp.float32),                 # bias_init=1
        "q_weight": jax.random.uniform(ks[1], (H, H), jnp.float32, -lim, lim),
        "k_weight": jax.random.uniform(ks[2], (H, H), jnp.float32, -lim, lim),
        "v_weight": jax.random.uniform(ks[3], (H, H), jnp.float32, -lim, lim),
        "w_weight": jax.random.uniform(ks[4], (OUT, H), jnp.float32, -lim, lim),
        "u_weight": jax.random.uniform(ks[5], (OUT, H), jnp.float32, -lim, lim),
        "noise_const": jax.random.normal(ks[6], (L, 1), jnp.float32),
        # nonzero so the ('const' noise_mode) path is actually exercised
        "noise_strength": jnp.float32(0.1),
        "bias": 0.1 * jax.random.normal(ks[7], (OUT,), jnp.float32),
    }
    x = jax.random.normal(ks[8], (B, L, H), jnp.float32)
    wlat = jax.random.normal(ks[9], (B, WDIM), jnp.float32)

    out = encoder_layer_forward(x, wlat, params, num_heads, act_clamp)
    out = jax.block_until_ready(out)
    ref = reference_forward(x, wlat, params, num_heads, act_clamp)
    assert out.shape == (B, L, OUT)
    # Tolerance allows for the EUP approx-reciprocal softmax normalization and the
    # reordered (MXU) demodulation-coefficient reduction; real bugs are >>1e-2.
    np.testing.assert_allclose(np.asarray(out), np.asarray(ref), rtol=5e-3, atol=5e-3)
    # TODO(synk): noise_mode='random' (torch.randn at forward time) is replicated via
    # the deterministic 'const' path; proj_weight=None branch only (as in __init__ default).
    print("KERNEL_OK")
</pallas_src>

<mosaic_0001>
module attributes {stable_mosaic.version = 11 : i64} {
  func.func @kernel(%arg0: i32, %arg1: memref<2x16x32xf32, #tpu.memory_space<vmem>>, %arg2: memref<2x32xf32, #tpu.memory_space<vmem>>, %arg3: memref<32x64xf32, #tpu.memory_space<vmem>>, %arg4: memref<1x64xf32, #tpu.memory_space<vmem>>, %arg5: memref<32x96xf32, #tpu.memory_space<vmem>>, %arg6: memref<32x96xf32, #tpu.memory_space<vmem>>, %arg7: memref<32x64xf32, #tpu.memory_space<vmem>>, %arg8: memref<32x64xf32, #tpu.memory_space<vmem>>, %arg9: memref<16x1xf32, #tpu.memory_space<vmem>>, %arg10: memref<1x32xf32, #tpu.memory_space<vmem>>, %arg11: memref<2x16x32xf32, #tpu.memory_space<vmem>>, %arg12: memref<2x16x32xf32, #tpu.memory_space<vmem>>) attributes {dimension_semantics = [#tpu.dimension_semantics<parallel>], iteration_bounds = array<i64: 1>, scalar_prefetch = 0 : i64, scratch_operands = 1 : i64, tpu.core_type = #tpu.core_type<tc>, window_params = [{transform_indices = @transform_0, window_bounds = array<i64: 2, 16, 32>}, {transform_indices = @transform_1, window_bounds = array<i64: 2, 32>}, {pipeline_mode = #tpu.pipeline_mode<synchronous>, transform_indices = @transform_2, window_bounds = array<i64: 32, 64>}, {pipeline_mode = #tpu.pipeline_mode<synchronous>, transform_indices = @transform_3, window_bounds = array<i64: 1, 64>}, {pipeline_mode = #tpu.pipeline_mode<synchronous>, transform_indices = @transform_4, window_bounds = array<i64: 32, 96>}, {pipeline_mode = #tpu.pipeline_mode<synchronous>, transform_indices = @transform_5, window_bounds = array<i64: 32, 96>}, {pipeline_mode = #tpu.pipeline_mode<synchronous>, transform_indices = @transform_6, window_bounds = array<i64: 32, 64>}, {pipeline_mode = #tpu.pipeline_mode<synchronous>, transform_indices = @transform_7, window_bounds = array<i64: 32, 64>}, {pipeline_mode = #tpu.pipeline_mode<synchronous>, transform_indices = @transform_8, window_bounds = array<i64: 16, 1>}, {pipeline_mode = #tpu.pipeline_mode<synchronous>, transform_indices = @transform_9, window_bounds = array<i64: 1, 32>}, {transform_indices = @transform_10, window_bounds = array<i64: 2, 16, 32>}]} {
    %c0 = arith.constant 0 : index
    %c0_0 = arith.constant 0 : index
    %c0_1 = arith.constant 0 : index
    %0 = vector.load %arg1[%c0, %c0_0, %c0_1] : memref<2x16x32xf32, #tpu.memory_space<vmem>>, vector<2x16x32xf32>
    %c0_2 = arith.constant 0 : index
    %c0_3 = arith.constant 0 : index
    %1 = vector.load %arg2[%c0_2, %c0_3] : memref<2x32xf32, #tpu.memory_space<vmem>>, vector<2x32xf32>
    %c0_4 = arith.constant 0 : index
    %c0_5 = arith.constant 0 : index
    %2 = vector.load %arg3[%c0_4, %c0_5] : memref<32x64xf32, #tpu.memory_space<vmem>>, vector<32x64xf32>
    %cst = arith.constant dense<0.000000e+00> : vector<2x64xf32>
    %3 = tpu.matmul %1, %2, %cst {dimension_numbers = #tpu.dot_dimension_numbers<[1], [0], [0], [1], [0, 0, 1, 1], [], []>} : vector<2x32xf32>, vector<32x64xf32>, vector<2x64xf32> -> vector<2x64xf32>
    %c0_6 = arith.constant 0 : index
    %c0_7 = arith.constant 0 : index
    %4 = vector.load %arg4[%c0_6, %c0_7] : memref<1x64xf32, #tpu.memory_space<vmem>>, vector<1x64xf32>
    %5 = vector.broadcast %4 : vector<1x64xf32> to vector<2x64xf32>
    %6 = arith.addf %3, %5 : vector<2x64xf32>
    %7 = vector.extract_strided_slice %6 {offsets = [0, 0], sizes = [2, 32], strides = [1, 1]} : vector<2x64xf32> to vector<2x32xf32>
    %8 = vector.extract_strided_slice %6 {offsets = [0, 32], sizes = [2, 32], strides = [1, 1]} : vector<2x64xf32> to vector<2x32xf32>
    %9 = arith.mulf %7, %7 : vector<2x32xf32>
    %c0_8 = arith.constant 0 : index
    %c0_9 = arith.constant 0 : index
    %10 = vector.load %arg6[%c0_8, %c0_9] : memref<32x96xf32, #tpu.memory_space<vmem>>, vector<32x96xf32>
    %cst_10 = arith.constant dense<0.000000e+00> : vector<2x96xf32>
    %11 = tpu.matmul %9, %10, %cst_10 {dimension_numbers = #tpu.dot_dimension_numbers<[1], [0], [0], [1], [0, 0, 1, 1], [], []>} : vector<2x32xf32>, vector<32x96xf32>, vector<2x96xf32> -> vector<2x96xf32>
    %cst_11 = arith.constant 9.99999993E-9 : f32
    %12 = vector.broadcast %cst_11 : f32 to vector<2x96xf32>
    %13 = arith.addf %11, %12 : vector<2x96xf32>
    %14 = math.rsqrt %13 : vector<2x96xf32>
    %15 = arith.mulf %8, %8 : vector<2x32xf32>
    %c0_12 = arith.constant 0 : index
    %c0_13 = arith.constant 0 : index
    %16 = vector.load %arg8[%c0_12, %c0_13] : memref<32x64xf32, #tpu.memory_space<vmem>>, vector<32x64xf32>
    %cst_14 = arith.constant dense<0.000000e+00> : vector<2x64xf32>
    %17 = tpu.matmul %15, %16, %cst_14 {dimension_numbers = #tpu.dot_dimension_numbers<[1], [0], [0], [1], [0, 0, 1, 1], [], []>} : vector<2x32xf32>, vector<32x64xf32>, vector<2x64xf32> -> vector<2x64xf32>
    %cst_15 = arith.constant 9.99999993E-9 : f32
    %18 = vector.broadcast %cst_15 : f32 to vector<2x64xf32>
    %19 = arith.addf %17, %18 : vector<2x64xf32>
    %20 = math.rsqrt %19 : vector<2x64xf32>
    %21 = vector.extract_strided_slice %20 {offsets = [0, 0], sizes = [2, 32], strides = [1, 1]} : vector<2x64xf32> to vector<2x32xf32>
    %22 = vector.extract_strided_slice %20 {offsets = [0, 32], sizes = [2, 32], strides = [1, 1]} : vector<2x64xf32> to vector<2x32xf32>
    %cst_16 = arith.constant 0.353553385 : f32
    %23 = vector.broadcast %cst_16 : f32 to vector<2x32xf32>
    %cst_17 = arith.constant 1.000000e+00 : f32
    %24 = vector.broadcast %cst_17 : f32 to vector<2x32xf32>
    %25 = tpu.concatenate %23, %24, %8 in 1 : vector<2x32xf32>, vector<2x32xf32>, vector<2x32xf32> -> vector<2x96xf32>
    %26 = arith.mulf %14, %25 : vector<2x96xf32>
    %27 = vector.shape_cast %7 : vector<2x32xf32> to vector<2x1x32xf32>
    %28 = vector.broadcast %27 : vector<2x1x32xf32> to vector<2x16x32xf32>
    %29 = arith.mulf %0, %28 : vector<2x16x32xf32>
    %cst_18 = arith.constant dense<0.000000e+00> : vector<2x16xf32>
    %30 = vector.multi_reduction <add>, %29, %cst_18 [2] : vector<2x16x32xf32> to vector<2x16xf32>
    %31 = vector.shape_cast %30 : vector<2x16xf32> to vector<2x16x1xf32>
    %cst_19 = arith.constant 3.200000e+01 : f32
    %32 = vector.broadcast %cst_19 : f32 to vector<2x16x1xf32>
    %33 = arith.divf %31, %32 : vector<2x16x1xf32>
    %34 = vector.broadcast %33 : vector<2x16x1xf32> to vector<2x16x32xf32>
    %35 = arith.subf %29, %34 : vector<2x16x32xf32>
    %36 = arith.mulf %35, %35 : vector<2x16x32xf32>
    %cst_20 = arith.constant dense<0.000000e+00> : vector<2x16xf32>
    %37 = vector.multi_reduction <add>, %36, %cst_20 [2] : vector<2x16x32xf32> to vector<2x16xf32>
    %38 = vector.shape_cast %37 : vector<2x16xf32> to vector<2x16x1xf32>
    %cst_21 = arith.constant 3.200000e+01 : f32
    %39 = vector.broadcast %cst_21 : f32 to vector<2x16x1xf32>
    %40 = arith.divf %38, %39 : vector<2x16x1xf32>
    %41 = vector.broadcast %33 : vector<2x16x1xf32> to vector<2x16x32xf32>
    %42 = arith.subf %29, %41 : vector<2x16x32xf32>
    %cst_22 = arith.constant 9.99999974E-6 : f32
    %43 = vector.broadcast %cst_22 : f32 to vector<2x16x1xf32>
    %44 = arith.addf %40, %43 : vector<2x16x1xf32>
    %45 = math.rsqrt %44 : vector<2x16x1xf32>
    %46 = vector.broadcast %45 : vector<2x16x1xf32> to vector<2x16x32xf32>
    %47 = arith.mulf %42, %46 : vector<2x16x32xf32>
    %48 = vector.shape_cast %47 : vector<2x16x32xf32> to vector<32x32xf32>
    %c0_23 = arith.constant 0 : index
    %c0_24 = arith.constant 0 : index
    %49 = vector.load %arg5[%c0_23, %c0_24] : memref<32x96xf32, #tpu.memory_space<vmem>>, vector<32x96xf32>
    %cst_25 = arith.constant dense<0.000000e+00> : vector<32x96xf32>
    %50 = tpu.matmul %48, %49, %cst_25 {dimension_numbers = #tpu.dot_dimension_numbers<[1], [0], [0], [1], [0, 0, 1, 1], [], []>} : vector<32x32xf32>, vector<32x96xf32>, vector<32x96xf32> -> vector<32x96xf32>
    %51 = vector.shape_cast %50 : vector<32x96xf32> to vector<2x16x96xf32>
    %52 = vector.shape_cast %26 : vector<2x96xf32> to vector<2x1x96xf32>
    %53 = vector.broadcast %52 : vector<2x1x96xf32> to vector<2x16x96xf32>
    %54 = arith.mulf %51, %53 : vector<2x16x96xf32>
    %55 = vector.extract_strided_slice %54 {offsets = [0, 0, 64], sizes = [2, 16, 32], strides = [1, 1, 1]} : vector<2x16x96xf32> to vector<2x16x32xf32>
    %56 = vector.extract_strided_slice %54 {offsets = [0, 0, 0], sizes = [1, 16, 8], strides = [1, 1, 1]} : vector<2x16x96xf32> to vector<1x16x8xf32>
    %57 = vector.shape_cast %56 : vector<1x16x8xf32> to vector<16x8xf32>
    %58 = vector.extract_strided_slice %54 {offsets = [0, 0, 32], sizes = [1, 16, 8], strides = [1, 1, 1]} : vector<2x16x96xf32> to vector<1x16x8xf32>
    %59 = vector.shape_cast %58 : vector<1x16x8xf32> to vector<16x8xf32>
    %60 = vector.extract_strided_slice %54 {offsets = [0, 0, 64], sizes = [1, 16, 8], strides = [1, 1, 1]} : vector<2x16x96xf32> to vector<1x16x8xf32>
    %61 = vector.shape_cast %60 : vector<1x16x8xf32> to vector<16x8xf32>
    %cst_26 = arith.constant dense<0.000000e+00> : vector<16x16xf32>
    %62 = tpu.matmul %57, %59, %cst_26 {dimension_numbers = #tpu.dot_dimension_numbers<[1], [1], [0], [0], [0, 0, 1, 0], [], []>} : vector<16x8xf32>, vector<16x8xf32>, vector<16x16xf32> -> vector<16x16xf32>
    %cst_27 = arith.constant dense<0xFF800000> : vector<16xf32>
    %63 = vector.multi_reduction <maximumf>, %62, %cst_27 [1] : vector<16x16xf32> to vector<16xf32>
    %64 = vector.shape_cast %63 : vector<16xf32> to vector<16x1xf32>
    %65 = vector.broadcast %64 : vector<16x1xf32> to vector<16x16xf32>
    %66 = arith.subf %62, %65 : vector<16x16xf32>
    %67 = math.exp %66 : vector<16x16xf32>
    %cst_28 = arith.constant dense<0.000000e+00> : vector<16xf32>
    %68 = vector.multi_reduction <add>, %67, %cst_28 [1] : vector<16x16xf32> to vector<16xf32>
    %69 = vector.shape_cast %68 : vector<16xf32> to vector<16x1xf32>
    %70 = tpu.reciprocal %69 {approx = true} : vector<16x1xf32> -> vector<16x1xf32>
    %71 = vector.broadcast %70 : vector<16x1xf32> to vector<16x16xf32>
    %72 = arith.mulf %67, %71 : vector<16x16xf32>
    %cst_29 = arith.constant dense<0.000000e+00> : vector<16x8xf32>
    %73 = tpu.matmul %72, %61, %cst_29 {dimension_numbers = #tpu.dot_dimension_numbers<[1], [0], [0], [1], [0, 0, 1, 1], [], []>} : vector<16x16xf32>, vector<16x8xf32>, vector<16x8xf32> -> vector<16x8xf32>
    %c0_30 = arith.constant 0 : index
    %c0_31 = arith.constant 0 : index
    %c0_32 = arith.constant 0 : index
    %74 = vector.load %arg12[%c0_30, %c0_31, %c0_32] : memref<2x16x32xf32, #tpu.memory_space<vmem>>, vector<1x16x8xf32>
    %75 = vector.shape_cast %74 : vector<1x16x8xf32> to vector<16x8xf32>
    %76 = vector.shape_cast %73 : vector<16x8xf32> to vector<1x16x8xf32>
    tpu.vector_store %arg12[%c0_30, %c0_31, %c0_32], %76 {strides = array<i32>} : memref<2x16x32xf32, #tpu.memory_space<vmem>>, vector<1x16x8xf32>,
    %77 = vector.extract_strided_slice %54 {offsets = [0, 0, 8], sizes = [1, 16, 8], strides = [1, 1, 1]} : vector<2x16x96xf32> to vector<1x16x8xf32>
    %78 = vector.shape_cast %77 : vector<1x16x8xf32> to vector<16x8xf32>
    %79 = vector.extract_strided_slice %54 {offsets = [0, 0, 40], sizes = [1, 16, 8], strides = [1, 1, 1]} : vector<2x16x96xf32> to vector<1x16x8xf32>
    %80 = vector.shape_cast %79 : vector<1x16x8xf32> to vector<16x8xf32>
    %81 = vector.extract_strided_slice %54 {offsets = [0, 0, 72], sizes = [1, 16, 8], strides = [1, 1, 1]} : vector<2x16x96xf32> to vector<1x16x8xf32>
    %82 = vector.shape_cast %81 : vector<1x16x8xf32> to vector<16x8xf32>
    %cst_33 = arith.constant dense<0.000000e+00> : vector<16x16xf32>
    %83 = tpu.matmul %78, %80, %cst_33 {dimension_numbers = #tpu.dot_dimension_numbers<[1], [1], [0], [0], [0, 0, 1, 0], [], []>} : vector<16x8xf32>, vector<16x8xf32>, vector<16x16xf32> -> vector<16x16xf32>
    %cst_34 = arith.constant dense<0xFF800000> : vector<16xf32>
    %84 = vector.multi_reduction <maximumf>, %83, %cst_34 [1] : vector<16x16xf32> to vector<16xf32>
    %85 = vector.shape_cast %84 : vector<16xf32> to vector<16x1xf32>
    %86 = vector.broadcast %85 : vector<16x1xf32> to vector<16x16xf32>
    %87 = arith.subf %83, %86 : vector<16x16xf32>
    %88 = math.exp %87 : vector<16x16xf32>
    %cst_35 = arith.constant dense<0.000000e+00> : vector<16xf32>
    %89 = vector.multi_reduction <add>, %88, %cst_35 [1] : vector<16x16xf32> to vector<16xf32>
    %90 = vector.shape_cast %89 : vector<16xf32> to vector<16x1xf32>
    %91 = tpu.reciprocal %90 {approx = true} : vector<16x1xf32> -> vector<16x1xf32>
    %92 = vector.broadcast %91 : vector<16x1xf32> to vector<16x16xf32>
    %93 = arith.mulf %88, %92 : vector<16x16xf32>
    %cst_36 = arith.constant dense<0.000000e+00> : vector<16x8xf32>
    %94 = tpu.matmul %93, %82, %cst_36 {dimension_numbers = #tpu.dot_dimension_numbers<[1], [0], [0], [1], [0, 0, 1, 1], [], []>} : vector<16x16xf32>, vector<16x8xf32>, vector<16x8xf32> -> vector<16x8xf32>
    %c0_37 = arith.constant 0 : index
    %c0_38 = arith.constant 0 : index
    %c8 = arith.constant 8 : index
    %95 = vector.load %arg12[%c0_37, %c0_38, %c8] : memref<2x16x32xf32, #tpu.memory_space<vmem>>, vector<1x16x8xf32>
    %96 = vector.shape_cast %95 : vector<1x16x8xf32> to vector<16x8xf32>
    %97 = vector.shape_cast %94 : vector<16x8xf32> to vector<1x16x8xf32>
    tpu.vector_store %arg12[%c0_37, %c0_38, %c8], %97 {strides = array<i32>} : memref<2x16x32xf32, #tpu.memory_space<vmem>>, vector<1x16x8xf32>,
    %98 = vector.extract_strided_slice %54 {offsets = [0, 0, 16], sizes = [1, 16, 8], strides = [1, 1, 1]} : vector<2x16x96xf32> to vector<1x16x8xf32>
    %99 = vector.shape_cast %98 : vector<1x16x8xf32> to vector<16x8xf32>
    %100 = vector.extract_strided_slice %54 {offsets = [0, 0, 48], sizes = [1, 16, 8], strides = [1, 1, 1]} : vector<2x16x96xf32> to vector<1x16x8xf32>
    %101 = vector.shape_cast %100 : vector<1x16x8xf32> to vector<16x8xf32>
    %102 = vector.extract_strided_slice %54 {offsets = [0, 0, 80], sizes = [1, 16, 8], strides = [1, 1, 1]} : vector<2x16x96xf32> to vector<1x16x8xf32>
    %103 = vector.shape_cast %102 : vector<1x16x8xf32> to vector<16x8xf32>
    %cst_39 = arith.constant dense<0.000000e+00> : vector<16x16xf32>
    %104 = tpu.matmul %99, %101, %cst_39 {dimension_numbers = #tpu.dot_dimension_numbers<[1], [1], [0], [0], [0, 0, 1, 0], [], []>} : vector<16x8xf32>, vector<16x8xf32>, vector<16x16xf32> -> vector<16x16xf32>
    %cst_40 = arith.constant dense<0xFF800000> : vector<16xf32>
    %105 = vector.multi_reduction <maximumf>, %104, %cst_40 [1] : vector<16x16xf32> to vector<16xf32>
    %106 = vector.shape_cast %105 : vector<16xf32> to vector<16x1xf32>
    %107 = vector.broadcast %106 : vector<16x1xf32> to vector<16x16xf32>
    %108 = arith.subf %104, %107 : vector<16x16xf32>
    %109 = math.exp %108 : vector<16x16xf32>
    %cst_41 = arith.constant dense<0.000000e+00> : vector<16xf32>
    %110 = vector.multi_reduction <add>, %109, %cst_41 [1] : vector<16x16xf32> to vector<16xf32>
    %111 = vector.shape_cast %110 : vector<16xf32> to vector<16x1xf32>
    %112 = tpu.reciprocal %111 {approx = true} : vector<16x1xf32> -> vector<16x1xf32>
    %113 = vector.broadcast %112 : vector<16x1xf32> to vector<16x16xf32>
    %114 = arith.mulf %109, %113 : vector<16x16xf32>
    %cst_42 = arith.constant dense<0.000000e+00> : vector<16x8xf32>
    %115 = tpu.matmul %114, %103, %cst_42 {dimension_numbers = #tpu.dot_dimension_numbers<[1], [0], [0], [1], [0, 0, 1, 1], [], []>} : vector<16x16xf32>, vector<16x8xf32>, vector<16x8xf32> -> vector<16x8xf32>
    %c0_43 = arith.constant 0 : index
    %c0_44 = arith.constant 0 : index
    %c16 = arith.constant 16 : index
    %116 = vector.load %arg12[%c0_43, %c0_44, %c16] : memref<2x16x32xf32, #tpu.memory_space<vmem>>, vector<1x16x8xf32>
    %117 = vector.shape_cast %116 : vector<1x16x8xf32> to vector<16x8xf32>
    %118 = vector.shape_cast %115 : vector<16x8xf32> to vector<1x16x8xf32>
    tpu.vector_store %arg12[%c0_43, %c0_44, %c16], %118 {strides = array<i32>} : memref<2x16x32xf32, #tpu.memory_space<vmem>>, vector<1x16x8xf32>,
    %119 = vector.extract_strided_slice %54 {offsets = [0, 0, 24], sizes = [1, 16, 8], strides = [1, 1, 1]} : vector<2x16x96xf32> to vector<1x16x8xf32>
    %120 = vector.shape_cast %119 : vector<1x16x8xf32> to vector<16x8xf32>
    %121 = vector.extract_strided_slice %54 {offsets = [0, 0, 56], sizes = [1, 16, 8], strides = [1, 1, 1]} : vector<2x16x96xf32> to vector<1x16x8xf32>
    %122 = vector.shape_cast %121 : vector<1x16x8xf32> to vector<16x8xf32>
    %123 = vector.extract_strided_slice %54 {offsets = [0, 0, 88], sizes = [1, 16, 8], strides = [1, 1, 1]} : vector<2x16x96xf32> to vector<1x16x8xf32>
    %124 = vector.shape_cast %123 : vector<1x16x8xf32> to vector<16x8xf32>
    %cst_45 = arith.constant dense<0.000000e+00> : vector<16x16xf32>
    %125 = tpu.matmul %120, %122, %cst_45 {dimension_numbers = #tpu.dot_dimension_numbers<[1], [1], [0], [0], [0, 0, 1, 0], [], []>} : vector<16x8xf32>, vector<16x8xf32>, vector<16x16xf32> -> vector<16x16xf32>
    %cst_46 = arith.constant dense<0xFF800000> : vector<16xf32>
    %126 = vector.multi_reduction <maximumf>, %125, %cst_46 [1] : vector<16x16xf32> to vector<16xf32>
    %127 = vector.shape_cast %126 : vector<16xf32> to vector<16x1xf32>
    %128 = vector.broadcast %127 : vector<16x1xf32> to vector<16x16xf32>
    %129 = arith.subf %125, %128 : vector<16x16xf32>
    %130 = math.exp %129 : vector<16x16xf32>
    %cst_47 = arith.constant dense<0.000000e+00> : vector<16xf32>
    %131 = vector.multi_reduction <add>, %130, %cst_47 [1] : vector<16x16xf32> to vector<16xf32>
    %132 = vector.shape_cast %131 : vector<16xf32> to vector<16x1xf32>
    %133 = tpu.reciprocal %132 {approx = true} : vector<16x1xf32> -> vector<16x1xf32>
    %134 = vector.broadcast %133 : vector<16x1xf32> to vector<16x16xf32>
    %135 = arith.mulf %130, %134 : vector<16x16xf32>
    %cst_48 = arith.constant dense<0.000000e+00> : vector<16x8xf32>
    %136 = tpu.matmul %135, %124, %cst_48 {dimension_numbers = #tpu.dot_dimension_numbers<[1], [0], [0], [1], [0, 0, 1, 1], [], []>} : vector<16x16xf32>, vector<16x8xf32>, vector<16x8xf32> -> vector<16x8xf32>
    %c0_49 = arith.constant 0 : index
    %c0_50 = arith.constant 0 : index
    %c24 = arith.constant 24 : index
    %137 = vector.load %arg12[%c0_49, %c0_50, %c24] : memref<2x16x32xf32, #tpu.memory_space<vmem>>, vector<1x16x8xf32>
    %138 = vector.shape_cast %137 : vector<1x16x8xf32> to vector<16x8xf32>
    %139 = vector.shape_cast %136 : vector<16x8xf32> to vector<1x16x8xf32>
    tpu.vector_store %arg12[%c0_49, %c0_50, %c24], %139 {strides = array<i32>} : memref<2x16x32xf32, #tpu.memory_space<vmem>>, vector<1x16x8xf32>,
    %140 = vector.extract_strided_slice %54 {offsets = [1, 0, 0], sizes = [1, 16, 8], strides = [1, 1, 1]} : vector<2x16x96xf32> to vector<1x16x8xf32>
    %141 = vector.shape_cast %140 : vector<1x16x8xf32> to vector<16x8xf32>
    %142 = vector.extract_strided_slice %54 {offsets = [1, 0, 32], sizes = [1, 16, 8], strides = [1, 1, 1]} : vector<2x16x96xf32> to vector<1x16x8xf32>
    %143 = vector.shape_cast %142 : vector<1x16x8xf32> to vector<16x8xf32>
    %144 = vector.extract_strided_slice %54 {offsets = [1, 0, 64], sizes = [1, 16, 8], strides = [1, 1, 1]} : vector<2x16x96xf32> to vector<1x16x8xf32>
    %145 = vector.shape_cast %144 : vector<1x16x8xf32> to vector<16x8xf32>
    %cst_51 = arith.constant dense<0.000000e+00> : vector<16x16xf32>
    %146 = tpu.matmul %141, %143, %cst_51 {dimension_numbers = #tpu.dot_dimension_numbers<[1], [1], [0], [0], [0, 0, 1, 0], [], []>} : vector<16x8xf32>, vector<16x8xf32>, vector<16x16xf32> -> vector<16x16xf32>
    %cst_52 = arith.constant dense<0xFF800000> : vector<16xf32>
    %147 = vector.multi_reduction <maximumf>, %146, %cst_52 [1] : vector<16x16xf32> to vector<16xf32>
    %148 = vector.shape_cast %147 : vector<16xf32> to vector<16x1xf32>
    %149 = vector.broadcast %148 : vector<16x1xf32> to vector<16x16xf32>
    %150 = arith.subf %146, %149 : vector<16x16xf32>
    %151 = math.exp %150 : vector<16x16xf32>
    %cst_53 = arith.constant dense<0.000000e+00> : vector<16xf32>
    %152 = vector.multi_reduction <add>, %151, %cst_53 [1] : vector<16x16xf32> to vector<16xf32>
    %153 = vector.shape_cast %152 : vector<16xf32> to vector<16x1xf32>
    %154 = tpu.reciprocal %153 {approx = true} : vector<16x1xf32> -> vector<16x1xf32>
    %155 = vector.broadcast %154 : vector<16x1xf32> to vector<16x16xf32>
    %156 = arith.mulf %151, %155 : vector<16x16xf32>
    %cst_54 = arith.constant dense<0.000000e+00> : vector<16x8xf32>
    %157 = tpu.matmul %156, %145, %cst_54 {dimension_numbers = #tpu.dot_dimension_numbers<[1], [0], [0], [1], [0, 0, 1, 1], [], []>} : vector<16x16xf32>, vector<16x8xf32>, vector<16x8xf32> -> vector<16x8xf32>
    %c1 = arith.constant 1 : index
    %c0_55 = arith.constant 0 : index
    %c0_56 = arith.constant 0 : index
    %158 = vector.load %arg12[%c1, %c0_55, %c0_56] : memref<2x16x32xf32, #tpu.memory_space<vmem>>, vector<1x16x8xf32>
    %159 = vector.shape_cast %158 : vector<1x16x8xf32> to vector<16x8xf32>
    %160 = vector.shape_cast %157 : vector<16x8xf32> to vector<1x16x8xf32>
    tpu.vector_store %arg12[%c1, %c0_55, %c0_56], %160 {strides = array<i32>} : memref<2x16x32xf32, #tpu.memory_space<vmem>>, vector<1x16x8xf32>,
    %161 = vector.extract_strided_slice %54 {offsets = [1, 0, 8], sizes = [1, 16, 8], strides = [1, 1, 1]} : vector<2x16x96xf32> to vector<1x16x8xf32>
    %162 = vector.shape_cast %161 : vector<1x16x8xf32> to vector<16x8xf32>
    %163 = vector.extract_strided_slice %54 {offsets = [1, 0, 40], sizes = [1, 16, 8], strides = [1, 1, 1]} : vector<2x16x96xf32> to vector<1x16x8xf32>
    %164 = vector.shape_cast %163 : vector<1x16x8xf32> to vector<16x8xf32>
    %165 = vector.extract_strided_slice %54 {offsets = [1, 0, 72], sizes = [1, 16, 8], strides = [1, 1, 1]} : vector<2x16x96xf32> to vector<1x16x8xf32>
    %166 = vector.shape_cast %165 : vector<1x16x8xf32> to vector<16x8xf32>
    %cst_57 = arith.constant dense<0.000000e+00> : vector<16x16xf32>
    %167 = tpu.matmul %162, %164, %cst_57 {dimension_numbers = #tpu.dot_dimension_numbers<[1], [1], [0], [0], [0, 0, 1, 0], [], []>} : vector<16x8xf32>, vector<16x8xf32>, vector<16x16xf32> -> vector<16x16xf32>
    %cst_58 = arith.constant dense<0xFF800000> : vector<16xf32>
    %168 = vector.multi_reduction <maximumf>, %167, %cst_58 [1] : vector<16x16xf32> to vector<16xf32>
    %169 = vector.shape_cast %168 : vector<16xf32> to vector<16x1xf32>
    %170 = vector.broadcast %169 : vector<16x1xf32> to vector<16x16xf32>
    %171 = arith.subf %167, %170 : vector<16x16xf32>
    %172 = math.exp %171 : vector<16x16xf32>
    %cst_59 = arith.constant dense<0.000000e+00> : vector<16xf32>
    %173 = vector.multi_reduction <add>, %172, %cst_59 [1] : vector<16x16xf32> to vector<16xf32>
    %174 = vector.shape_cast %173 : vector<16xf32> to vector<16x1xf32>
    %175 = tpu.reciprocal %174 {approx = true} : vector<16x1xf32> -> vector<16x1xf32>
    %176 = vector.broadcast %175 : vector<16x1xf32> to vector<16x16xf32>
    %177 = arith.mulf %172, %176 : vector<16x16xf32>
    %cst_60 = arith.constant dense<0.000000e+00> : vector<16x8xf32>
    %178 = tpu.matmul %177, %166, %cst_60 {dimension_numbers = #tpu.dot_dimension_numbers<[1], [0], [0], [1], [0, 0, 1, 1], [], []>} : vector<16x16xf32>, vector<16x8xf32>, vector<16x8xf32> -> vector<16x8xf32>
    %c1_61 = arith.constant 1 : index
    %c0_62 = arith.constant 0 : index
    %c8_63 = arith.constant 8 : index
    %179 = vector.load %arg12[%c1_61, %c0_62, %c8_63] : memref<2x16x32xf32, #tpu.memory_space<vmem>>, vector<1x16x8xf32>
    %180 = vector.shape_cast %179 : vector<1x16x8xf32> to vector<16x8xf32>
    %181 = vector.shape_cast %178 : vector<16x8xf32> to vector<1x16x8xf32>
    tpu.vector_store %arg12[%c1_61, %c0_62, %c8_63], %181 {strides = array<i32>} : memref<2x16x32xf32, #tpu.memory_space<vmem>>, vector<1x16x8xf32>,
    %182 = vector.extract_strided_slice %54 {offsets = [1, 0, 16], sizes = [1, 16, 8], strides = [1, 1, 1]} : vector<2x16x96xf32> to vector<1x16x8xf32>
    %183 = vector.shape_cast %182 : vector<1x16x8xf32> to vector<16x8xf32>
    %184 = vector.extract_strided_slice %54 {offsets = [1, 0, 48], sizes = [1, 16, 8], strides = [1, 1, 1]} : vector<2x16x96xf32> to vector<1x16x8xf32>
    %185 = vector.shape_cast %184 : vector<1x16x8xf32> to vector<16x8xf32>
    %186 = vector.extract_strided_slice %54 {offsets = [1, 0, 80], sizes = [1, 16, 8], strides = [1, 1, 1]} : vector<2x16x96xf32> to vector<1x16x8xf32>
    %187 = vector.shape_cast %186 : vector<1x16x8xf32> to vector<16x8xf32>
    %cst_64 = arith.constant dense<0.000000e+00> : vector<16x16xf32>
    %188 = tpu.matmul %183, %185, %cst_64 {dimension_numbers = #tpu.dot_dimension_numbers<[1], [1], [0], [0], [0, 0, 1, 0], [], []>} : vector<16x8xf32>, vector<16x8xf32>, vector<16x16xf32> -> vector<16x16xf32>
    %cst_65 = arith.constant dense<0xFF800000> : vector<16xf32>
    %189 = vector.multi_reduction <maximumf>, %188, %cst_65 [1] : vector<16x16xf32> to vector<16xf32>
    %190 = vector.shape_cast %189 : vector<16xf32> to vector<16x1xf32>
    %191 = vector.broadcast %190 : vector<16x1xf32> to vector<16x16xf32>
    %192 = arith.subf %188, %191 : vector<16x16xf32>
    %193 = math.exp %192 : vector<16x16xf32>
    %cst_66 = arith.constant dense<0.000000e+00> : vector<16xf32>
    %194 = vector.multi_reduction <add>, %193, %cst_66 [1] : vector<16x16xf32> to vector<16xf32>
    %195 = vector.shape_cast %194 : vector<16xf32> to vector<16x1xf32>
    %196 = tpu.reciprocal %195 {approx = true} : vector<16x1xf32> -> vector<16x1xf32>
    %197 = vector.broadcast %196 : vector<16x1xf32> to vector<16x16xf32>
    %198 = arith.mulf %193, %197 : vector<16x16xf32>
    %cst_67 = arith.constant dense<0.000000e+00> : vector<16x8xf32>
    %199 = tpu.matmul %198, %187, %cst_67 {dimension_numbers = #tpu.dot_dimension_numbers<[1], [0], [0], [1], [0, 0, 1, 1], [], []>} : vector<16x16xf32>, vector<16x8xf32>, vector<16x8xf32> -> vector<16x8xf32>
    %c1_68 = arith.constant 1 : index
    %c0_69 = arith.constant 0 : index
    %c16_70 = arith.constant 16 : index
    %200 = vector.load %arg12[%c1_68, %c0_69, %c16_70] : memref<2x16x32xf32, #tpu.memory_space<vmem>>, vector<1x16x8xf32>
    %201 = vector.shape_cast %200 : vector<1x16x8xf32> to vector<16x8xf32>
    %202 = vector.shape_cast %199 : vector<16x8xf32> to vector<1x16x8xf32>
    tpu.vector_store %arg12[%c1_68, %c0_69, %c16_70], %202 {strides = array<i32>} : memref<2x16x32xf32, #tpu.memory_space<vmem>>, vector<1x16x8xf32>,
    %203 = vector.extract_strided_slice %54 {offsets = [1, 0, 24], sizes = [1, 16, 8], strides = [1, 1, 1]} : vector<2x16x96xf32> to vector<1x16x8xf32>
    %204 = vector.shape_cast %203 : vector<1x16x8xf32> to vector<16x8xf32>
    %205 = vector.extract_strided_slice %54 {offsets = [1, 0, 56], sizes = [1, 16, 8], strides = [1, 1, 1]} : vector<2x16x96xf32> to vector<1x16x8xf32>
    %206 = vector.shape_cast %205 : vector<1x16x8xf32> to vector<16x8xf32>
    %207 = vector.extract_strided_slice %54 {offsets = [1, 0, 88], sizes = [1, 16, 8], strides = [1, 1, 1]} : vector<2x16x96xf32> to vector<1x16x8xf32>
    %208 = vector.shape_cast %207 : vector<1x16x8xf32> to vector<16x8xf32>
    %cst_71 = arith.constant dense<0.000000e+00> : vector<16x16xf32>
    %209 = tpu.matmul %204, %206, %cst_71 {dimension_numbers = #tpu.dot_dimension_numbers<[1], [1], [0], [0], [0, 0, 1, 0], [], []>} : vector<16x8xf32>, vector<16x8xf32>, vector<16x16xf32> -> vector<16x16xf32>
    %cst_72 = arith.constant dense<0xFF800000> : vector<16xf32>
    %210 = vector.multi_reduction <maximumf>, %209, %cst_72 [1] : vector<16x16xf32> to vector<16xf32>
    %211 = vector.shape_cast %210 : vector<16xf32> to vector<16x1xf32>
    %212 = vector.broadcast %211 : vector<16x1xf32> to vector<16x16xf32>
    %213 = arith.subf %209, %212 : vector<16x16xf32>
    %214 = math.exp %213 : vector<16x16xf32>
    %cst_73 = arith.constant dense<0.000000e+00> : vector<16xf32>
    %215 = vector.multi_reduction <add>, %214, %cst_73 [1] : vector<16x16xf32> to vector<16xf32>
    %216 = vector.shape_cast %215 : vector<16xf32> to vector<16x1xf32>
    %217 = tpu.reciprocal %216 {approx = true} : vector<16x1xf32> -> vector<16x1xf32>
    %218 = vector.broadcast %217 : vector<16x1xf32> to vector<16x16xf32>
    %219 = arith.mulf %214, %218 : vector<16x16xf32>
    %cst_74 = arith.constant dense<0.000000e+00> : vector<16x8xf32>
    %220 = tpu.matmul %219, %208, %cst_74 {dimension_numbers = #tpu.dot_dimension_numbers<[1], [0], [0], [1], [0, 0, 1, 1], [], []>} : vector<16x16xf32>, vector<16x8xf32>, vector<16x8xf32> -> vector<16x8xf32>
    %c1_75 = arith.constant 1 : index
    %c0_76 = arith.constant 0 : index
    %c24_77 = arith.constant 24 : index
    %221 = vector.load %arg12[%c1_75, %c0_76, %c24_77] : memref<2x16x32xf32, #tpu.memory_space<vmem>>, vector<1x16x8xf32>
    %222 = vector.shape_cast %221 : vector<1x16x8xf32> to vector<16x8xf32>
    %223 = vector.shape_cast %220 : vector<16x8xf32> to vector<1x16x8xf32>
    tpu.vector_store %arg12[%c1_75, %c0_76, %c24_77], %223 {strides = array<i32>} : memref<2x16x32xf32, #tpu.memory_space<vmem>>, vector<1x16x8xf32>,
    %c0_78 = arith.constant 0 : index
    %c0_79 = arith.constant 0 : index
    %c0_80 = arith.constant 0 : index
    %224 = vector.load %arg12[%c0_78, %c0_79, %c0_80] : memref<2x16x32xf32, #tpu.memory_space<vmem>>, vector<2x16x32xf32>
    %225 = vector.shape_cast %224 : vector<2x16x32xf32> to vector<32x32xf32>
    %226 = vector.shape_cast %55 : vector<2x16x32xf32> to vector<32x32xf32>
    %227 = tpu.concatenate %225, %226 in 0 : vector<32x32xf32>, vector<32x32xf32> -> vector<64x32xf32>
    %c0_81 = arith.constant 0 : index
    %c0_82 = arith.constant 0 : index
    %228 = vector.load %arg7[%c0_81, %c0_82] : memref<32x64xf32, #tpu.memory_space<vmem>>, vector<32x64xf32>
    %cst_83 = arith.constant dense<0.000000e+00> : vector<64x64xf32>
    %229 = tpu.matmul %227, %228, %cst_83 {dimension_numbers = #tpu.dot_dimension_numbers<[1], [0], [0], [1], [0, 0, 1, 1], [], []>} : vector<64x32xf32>, vector<32x64xf32>, vector<64x64xf32> -> vector<64x64xf32>
    %230 = vector.extract_strided_slice %229 {offsets = [0, 0], sizes = [32, 32], strides = [1, 1]} : vector<64x64xf32> to vector<32x32xf32>
    %231 = vector.shape_cast %230 : vector<32x32xf32> to vector<2x16x32xf32>
    %232 = vector.shape_cast %21 : vector<2x32xf32> to vector<2x1x32xf32>
    %233 = vector.broadcast %232 : vector<2x1x32xf32> to vector<2x16x32xf32>
    %234 = arith.mulf %231, %233 : vector<2x16x32xf32>
    %235 = vector.extract_strided_slice %229 {offsets = [32, 32], sizes = [32, 32], strides = [1, 1]} : vector<64x64xf32> to vector<32x32xf32>
    %236 = vector.shape_cast %235 : vector<32x32xf32> to vector<2x16x32xf32>
    %237 = vector.shape_cast %22 : vector<2x32xf32> to vector<2x1x32xf32>
    %238 = vector.broadcast %237 : vector<2x1x32xf32> to vector<2x16x32xf32>
    %239 = arith.mulf %236, %238 : vector<2x16x32xf32>
    %240 = arith.addf %234, %239 : vector<2x16x32xf32>
    %c0_84 = arith.constant 0 : index
    %c0_85 = arith.constant 0 : index
    %241 = vector.load %arg9[%c0_84, %c0_85] : memref<16x1xf32, #tpu.memory_space<vmem>>, vector<16x1xf32>
    %242 = vector.shape_cast %241 : vector<16x1xf32> to vector<1x16x1xf32>
    %243 = vector.broadcast %242 : vector<1x16x1xf32> to vector<2x16x32xf32>
    %244 = arith.addf %240, %243 : vector<2x16x32xf32>
    %c0_86 = arith.constant 0 : index
    %c0_87 = arith.constant 0 : index
    %245 = vector.load %arg10[%c0_86, %c0_87] : memref<1x32xf32, #tpu.memory_space<vmem>>, vector<1x32xf32>
    %246 = vector.shape_cast %245 : vector<1x32xf32> to vector<1x1x32xf32>
    %247 = vector.broadcast %246 : vector<1x1x32xf32> to vector<2x16x32xf32>
    %248 = arith.addf %244, %247 : vector<2x16x32xf32>
    %cst_88 = arith.constant 0.000000e+00 : f32
    %249 = vector.broadcast %cst_88 : f32 to vector<2x16x32xf32>
    %250 = arith.cmpf oge, %248, %249 : vector<2x16x32xf32>
    %cst_89 = arith.constant 2.000000e-01 : f32
    %251 = vector.broadcast %cst_89 : f32 to vector<2x16x32xf32>
    %252 = arith.mulf %251, %248 : vector<2x16x32xf32>
    %253 = arith.select %250, %248, %252 : vector<2x16x32xi1>, vector<2x16x32xf32>
    %cst_90 = arith.constant -2.560000e+02 : f32
    %cst_91 = arith.constant 2.560000e+02 : f32
    %254 = vector.broadcast %cst_90 : f32 to vector<2x16x32xf32>
    %255 = arith.maximumf %254, %253 : vector<2x16x32xf32>
    %256 = vector.broadcast %cst_91 : f32 to vector<2x16x32xf32>
    %257 = arith.minimumf %256, %255 : vector<2x16x32xf32>
    %c0_92 = arith.constant 0 : index
    %c0_93 = arith.constant 0 : index
    %c0_94 = arith.constant 0 : index
    %258 = vector.load %arg11[%c0_92, %c0_93, %c0_94] : memref<2x16x32xf32, #tpu.memory_space<vmem>>, vector<2x16x32xf32>
    tpu.vector_store %arg11[%c0_92, %c0_93, %c0_94], %257 {strides = array<i32>} : memref<2x16x32xf32, #tpu.memory_space<vmem>>, vector<2x16x32xf32>,
    return
  }
  func.func @transform_0(%arg0: i32) -> (i32, i32, i32) {
    %c0_i32 = arith.constant 0 : i32
    %c0_i32_0 = arith.constant 0 : i32
    %c0_i32_1 = arith.constant 0 : i32
    return %arg0, %c0_i32, %c0_i32_0 : i32, i32, i32
  }
  func.func @transform_1(%arg0: i32) -> (i32, i32) {
    %c0_i32 = arith.constant 0 : i32
    %c0_i32_0 = arith.constant 0 : i32
    return %arg0, %c0_i32 : i32, i32
  }
  func.func @transform_2(%arg0: i32) -> (i32, i32) {
    %c0_i32 = arith.constant 0 : i32
    %c0_i32_0 = arith.constant 0 : i32
    %c0_i32_1 = arith.constant 0 : i32
    return %c0_i32, %c0_i32_0 : i32, i32
  }
  func.func @transform_3(%arg0: i32) -> (i32, i32) {
    %c0_i32 = arith.constant 0 : i32
    %c0_i32_0 = arith.constant 0 : i32
    %c0_i32_1 = arith.constant 0 : i32
    return %c0_i32, %c0_i32_0 : i32, i32
  }
  func.func @transform_4(%arg0: i32) -> (i32, i32) {
    %c0_i32 = arith.constant 0 : i32
    %c0_i32_0 = arith.constant 0 : i32
    %c0_i32_1 = arith.constant 0 : i32
    return %c0_i32, %c0_i32_0 : i32, i32
  }
  func.func @transform_5(%arg0: i32) -> (i32, i32) {
    %c0_i32 = arith.constant 0 : i32
    %c0_i32_0 = arith.constant 0 : i32
    %c0_i32_1 = arith.constant 0 : i32
    return %c0_i32, %c0_i32_0 : i32, i32
  }
  func.func @transform_6(%arg0: i32) -> (i32, i32) {
    %c0_i32 = arith.constant 0 : i32
    %c0_i32_0 = arith.constant 0 : i32
    %c0_i32_1 = arith.constant 0 : i32
    return %c0_i32, %c0_i32_0 : i32, i32
  }
  func.func @transform_7(%arg0: i32) -> (i32, i32) {
    %c0_i32 = arith.constant 0 : i32
    %c0_i32_0 = arith.constant 0 : i32
    %c0_i32_1 = arith.constant 0 : i32
    return %c0_i32, %c0_i32_0 : i32, i32
  }
  func.func @transform_8(%arg0: i32) -> (i32, i32) {
    %c0_i32 = arith.constant 0 : i32
    %c0_i32_0 = arith.constant 0 : i32
    %c0_i32_1 = arith.constant 0 : i32
    return %c0_i32, %c0_i32_0 : i32, i32
  }
  func.func @transform_9(%arg0: i32) -> (i32, i32) {
    %c0_i32 = arith.constant 0 : i32
    %c0_i32_0 = arith.constant 0 : i32
    %c0_i32_1 = arith.constant 0 : i32
    return %c0_i32, %c0_i32_0 : i32, i32
  }
  func.func @transform_10(%arg0: i32) -> (i32, i32, i32) {
    %c0_i32 = arith.constant 0 : i32
    %c0_i32_0 = arith.constant 0 : i32
    %c0_i32_1 = arith.constant 0 : i32
    return %arg0, %c0_i32, %c0_i32_0 : i32, i32, i32
  }
}

</mosaic_0001>

<llo_original>
// kernel: tpu_custom_call.1
$region0: #{tpu_custom_call.1}
  #allocation0 [shape = 'u32[]', space=smem, size = 0x4, offset = 0x4, fixed_abs, tag = 'smem constant byte address 0x4 - core index']
  #allocation1 [shape = 'u32[72,128]{1,0:T(1,128)}', space=vmem, size = 0x9000, scoped, tag = 'internal scratch']
  #allocation2 [shape = 'f32[2,16,32]{2,1,0:T(8,128)}', space=vmem, size = 0x4000, scoped, tag = 'scratch operand']
  %s0 = inlined_call_operand.hbm [shape: f32[2,16,32], index: 0, kind: input, shape index: {}]
  %s1 = inlined_call_operand.vmem [shape: f32[2,32], index: 1, kind: input, shape index: {}]
  %s2 = inlined_call_operand.hbm [shape: f32[32,64], index: 2, kind: input, shape index: {}]
  %s3 = inlined_call_operand.vmem [shape: f32[1,64], index: 3, kind: input, shape index: {}]
  %s4 = inlined_call_operand.hbm [shape: f32[32,96], index: 4, kind: input, shape index: {}]
  %s5 = inlined_call_operand.hbm [shape: f32[32,96], index: 5, kind: input, shape index: {}]
  %s6 = inlined_call_operand.hbm [shape: f32[32,64], index: 6, kind: input, shape index: {}]
  %s7 = inlined_call_operand.hbm [shape: f32[32,64], index: 7, kind: input, shape index: {}]
  %s8 = inlined_call_operand.vmem [shape: f32[16,1], index: 8, kind: input, shape index: {}]
  %s9 = inlined_call_operand.vmem [shape: f32[1,32], index: 9, kind: input, shape index: {}]
  %s10 = inlined_call_operand.hbm [shape: f32[2,16,32], index: 10, kind: output, shape index: {}]
  %s11 = sld [smem:[#allocation0]]
  $region74: #{tpu_custom_call.1} parent=0
    _
  %s13 = ssub.s32 1, %s11
  %s14 = scalar_select 0, %s13, %s11
  $region1: #{tpu_custom_call.1} parent=0
    #allocation3 [shape = 'u8[16384]{0}', space=vmem, size = 0x4000, scoped, tag = 'input window, operand 0, single buffered']
    #allocation4 [shape = 's32[1]{0}', space=sflag, size = 0x4, scoped, tag = 'scoped memory for tpu_custom_call.1']
    #allocation5 [shape = 's32[1]{0}', space=sflag, size = 0x4, scoped, tag = 'scoped memory for tpu_custom_call.1']
    #allocation6 [shape = 'u8[16384]{0}', space=vmem, size = 0x4000, scoped, tag = 'input window, operand 2, single buffered']
    #allocation7 [shape = 's32[1]{0}', space=sflag, size = 0x4, scoped, tag = 'scoped memory for tpu_custom_call.1']
    #allocation8 [shape = 'u8[16384]{0}', space=vmem, size = 0x4000, scoped, tag = 'input window, operand 4, single buffered']
    #allocation9 [shape = 'u8[16384]{0}', space=vmem, size = 0x4000, scoped, tag = 'input window, operand 5, single buffered']
    #allocation10 [shape = 's32[1]{0}', space=sflag, size = 0x4, scoped, tag = 'scoped memory for tpu_custom_call.1']
    #allocation11 [shape = 'u8[16384]{0}', space=vmem, size = 0x4000, scoped, tag = 'input window, operand 6, single buffered']
    #allocation12 [shape = 'u8[16384]{0}', space=vmem, size = 0x4000, scoped, tag = 'input window, operand 7, single buffered']
    #allocation13 [shape = 's32[1]{0}', space=sflag, size = 0x4, scoped, tag = 'scoped memory for tpu_custom_call.1']
    #allocation14 [shape = 'u8[16384]{0}', space=vmem, size = 0x4000, scoped, tag = 'output window, operand 0, single buffered']
    %15 = vsyncpa [#allocation4], 0
    %16 = vsyncpa [#allocation7], 0
    %17 = vsyncpa [#allocation10], 0
    %18 = vsyncpa [#allocation13], 0
    %19 = vsyncpa [#allocation5], 0
    // Predicated region
    $region2: #{tpu_custom_call.1} parent=1 // pred_check
      _
    $region3: #{tpu_custom_call.1} parent=1 // pred_check_branch
      %21 = sbr.rel (0) target = $region5
    $region4: #{tpu_custom_call.1} parent=1 // pred_region
      %23 = vsyncadd [#allocation4], 0
      %s24 = sshll.u32 %s0, 4
      %s25 = int_to_ptr.hbm [resolvable:$true] %s24
      %s26 = sshll.u32 [#allocation3], 4
      %s27 = int_to_ptr.vmem [resolvable:$true] %s26
      %32 = dma.hbm_to_vmem [thread:$0]  %s25, 512, %s27, [#allocation4], 128, 128, 8
    $region5: #{tpu_custom_call.1} parent=1 // pred_fallthru
      _
    // Predicated region
    $region6: #{tpu_custom_call.1} parent=1 // pred_check
      _
    $region7: #{tpu_custom_call.1} parent=1 // pred_check_branch
      %34 = sbr.rel (0) target = $region9
    $region8: #{tpu_custom_call.1} parent=1 // pred_region
      _
    $region9: #{tpu_custom_call.1} parent=1 // pred_fallthru
      _
    // Predicated region
    $region10: #{tpu_custom_call.1} parent=1 // pred_check
      _
    $region11: #{tpu_custom_call.1} parent=1 // pred_check_branch
      %36 = sbr.rel (0) target = $region13
    $region12: #{tpu_custom_call.1} parent=1 // pred_region
      %38 = vsyncadd [#allocation7], 0
      %s39 = sshll.u32 %s2, 4
      %s40 = int_to_ptr.hbm [resolvable:$true] %s39
      %s41 = sshll.u32 [#allocation6], 4
      %s42 = int_to_ptr.vmem [resolvable:$true] %s41
      %47 = dma.hbm_to_vmem [thread:$0]  %s40, 512, %s42, [#allocation7], 128, 128, 8
    $region13: #{tpu_custom_call.1} parent=1 // pred_fallthru
      _
    // Predicated region
    $region14: #{tpu_custom_call.1} parent=1 // pred_check
      _
    $region15: #{tpu_custom_call.1} parent=1 // pred_check_branch
      %49 = sbr.rel (0) target = $region17
    $region16: #{tpu_custom_call.1} parent=1 // pred_region
      _
    $region17: #{tpu_custom_call.1} parent=1 // pred_fallthru
      _
    // Predicated region
    $region18: #{tpu_custom_call.1} parent=1 // pred_check
      _
    $region19: #{tpu_custom_call.1} parent=1 // pred_check_branch
      %51 = sbr.rel (0) target = $region21
    $region20: #{tpu_custom_call.1} parent=1 // pred_region
      %53 = vsyncadd [#allocation7], 0
      %s54 = sshll.u32 %s4, 4
      %s55 = int_to_ptr.hbm [resolvable:$true] %s54
      %s56 = sshll.u32 [#allocation8], 4
      %s57 = int_to_ptr.vmem [resolvable:$true] %s56
      %62 = dma.hbm_to_vmem [thread:$0]  %s55, 512, %s57, [#allocation7], 128, 128, 8
    $region21: #{tpu_custom_call.1} parent=1 // pred_fallthru
      _
    // Predicated region
    $region22: #{tpu_custom_call.1} parent=1 // pred_check
      _
    $region23: #{tpu_custom_call.1} parent=1 // pred_check_branch
      %64 = sbr.rel (0) target = $region25
    $region24: #{tpu_custom_call.1} parent=1 // pred_region
      %66 = vsyncadd [#allocation10], 0
      %s67 = sshll.u32 %s5, 4
      %s68 = int_to_ptr.hbm [resolvable:$true] %s67
      %s69 = sshll.u32 [#allocation9], 4
      %s70 = int_to_ptr.vmem [resolvable:$true] %s69
      %75 = dma.hbm_to_vmem [thread:$0]  %s68, 512, %s70, [#allocation10], 128, 128, 8
    $region25: #{tpu_custom_call.1} parent=1 // pred_fallthru
      _
    // Predicated region
    $region26: #{tpu_custom_call.1} parent=1 // pred_check
      _
    $region27: #{tpu_custom_call.1} parent=1 // pred_check_branch
      %77 = sbr.rel (0) target = $region29
    $region28: #{tpu_custom_call.1} parent=1 // pred_region
      %79 = vsyncadd [#allocation10], 0
      %s80 = sshll.u32 %s6, 4
      %s81 = int_to_ptr.hbm [resolvable:$true] %s80
      %s82 = sshll.u32 [#allocation11], 4
      %s83 = int_to_ptr.vmem [resolvable:$true] %s82
      %88 = dma.hbm_to_vmem [thread:$0]  %s81, 512, %s83, [#allocation10], 128, 128, 8
    $region29: #{tpu_custom_call.1} parent=1 // pred_fallthru
      _
    // Predicated region
    $region30: #{tpu_custom_call.1} parent=1 // pred_check
      _
    $region31: #{tpu_custom_call.1} parent=1 // pred_check_branch
      %90 = sbr.rel (0) target = $region33
    $region32: #{tpu_custom_call.1} parent=1 // pred_region
      %92 = vsyncadd [#allocation13], 0
      %s93 = sshll.u32 %s7, 4
      %s94 = int_to_ptr.hbm [resolvable:$true] %s93
      %s95 = sshll.u32 [#allocation12], 4
      %s96 = int_to_ptr.vmem [resolvable:$true] %s95
      %101 = dma.hbm_to_vmem [thread:$0]  %s94, 512, %s96, [#allocation13], 128, 128, 8
    $region33: #{tpu_custom_call.1} parent=1 // pred_fallthru
      _
    // Predicated region
    $region34: #{tpu_custom_call.1} parent=1 // pred_check
      _
    $region35: #{tpu_custom_call.1} parent=1 // pred_check_branch
      %103 = sbr.rel (0) target = $region37
    $region36: #{tpu_custom_call.1} parent=1 // pred_region
      _
    $region37: #{tpu_custom_call.1} parent=1 // pred_fallthru
      _
    // Predicated region
    $region38: #{tpu_custom_call.1} parent=1 // pred_check
      _
    $region39: #{tpu_custom_call.1} parent=1 // pred_check_branch
      %105 = sbr.rel (0) target = $region41
    $region40: #{tpu_custom_call.1} parent=1 // pred_region
      _
    $region41: #{tpu_custom_call.1} parent=1 // pred_fallthru
      _
    // Predicated region
    $region42: #{tpu_custom_call.1} parent=1 // pred_check
      _
    $region43: #{tpu_custom_call.1} parent=1 // pred_check_branch
      %107 = sbr.rel (0) target = $region45
    $region44: #{tpu_custom_call.1} parent=1 // pred_region
      %109 = dma.done [#allocation4], 512
    $region45: #{tpu_custom_call.1} parent=1 // pred_fallthru
      _
    // Predicated region
    $region46: #{tpu_custom_call.1} parent=1 // pred_check
      _
    $region47: #{tpu_custom_call.1} parent=1 // pred_check_branch
      %111 = sbr.rel (0) target = $region49
    $region48: #{tpu_custom_call.1} parent=1 // pred_region
      %113 = dma.done [#allocation7], 512
    $region49: #{tpu_custom_call.1} parent=1 // pred_fallthru
      _
    // Predicated region
    $region50: #{tpu_custom_call.1} parent=1 // pred_check
      _
    $region51: #{tpu_custom_call.1} parent=1 // pred_check_branch
      %115 = sbr.rel (0) target = $region53
    $region52: #{tpu_custom_call.1} parent=1 // pred_region
      %117 = dma.done [#allocation7], 512
    $region53: #{tpu_custom_call.1} parent=1 // pred_fallthru
      _
    // Predicated region
    $region54: #{tpu_custom_call.1} parent=1 // pred_check
      _
    $region55: #{tpu_custom_call.1} parent=1 // pred_check_branch
      %119 = sbr.rel (0) target = $region57
    $region56: #{tpu_custom_call.1} parent=1 // pred_region
      %121 = dma.done [#allocation10], 512
    $region57: #{tpu_custom_call.1} parent=1 // pred_fallthru
      _
    // Predicated region
    $region58: #{tpu_custom_call.1} parent=1 // pred_check
      _
    $region59: #{tpu_custom_call.1} parent=1 // pred_check_branch
      %123 = sbr.rel (0) target = $region61
    $region60: #{tpu_custom_call.1} parent=1 // pred_region
      %125 = dma.done [#allocation10], 512
    $region61: #{tpu_custom_call.1} parent=1 // pred_fallthru
      _
    // Predicated region
    $region62: #{tpu_custom_call.1} parent=1 // pred_check
      _
    $region63: #{tpu_custom_call.1} parent=1 // pred_check_branch
      %127 = sbr.rel (0) target = $region65
    $region64: #{tpu_custom_call.1} parent=1 // pred_region
      %129 = dma.done [#allocation13], 512
    $region65: #{tpu_custom_call.1} parent=1 // pred_fallthru
      _
    %v130 = vld [vmem:[#allocation3] sm:$0xff]
    %v131 = vld [vmem:[#allocation3 + $0x8] sm:$0xff]
    %v132 = vld [vmem:[#allocation3 + $0x10] sm:$0xff]
    %v133 = vld [vmem:[#allocation3 + $0x18] sm:$0xff]
    %v134 = vld [vmem:[%s1] sm:$0x3]
    %v135 = vld [vmem:[#allocation6] sm:$0xff]
    %v136 = vld [vmem:[#allocation6 + $0x8] sm:$0xff]
    %v137 = vld [vmem:[#allocation6 + $0x10] sm:$0xff]
    %v138 = vld [vmem:[#allocation6 + $0x18] sm:$0xff]
    %v139 = vld [vmem:[%s3] sm:$0x1]
    %v141 = vperm.slane %v139, 0
    %vm143 = vcmask 261120
    %v145 = vsel %vm143, %v134, 0
    %147 = vmatpush.msra.mxu0 0.0
    %148 = vmatpush.msra.mxu0 0.0
    %149 = vmatpush.msra.mxu0 0.0
    %150 = vmatpush.msra.mxu0 0.0
    %151 = vmatpush.msra.mxu0 0.0
    %152 = vmatpush.msra.mxu0 0.0
    %153 = vmatpush.msra.mxu0 0.0
    %154 = vmatpush.msra.mxu0 0.0
    %155 = vmatpush.msra.mxu0 0.0
    %156 = vmatpush.msra.mxu0 0.0
    %157 = vmatpush.msra.mxu0 0.0
    %158 = vmatpush.msra.mxu0 0.0
    %159 = vmatpush.msra.mxu0 %v138
    %160 = vmatpush.msra.mxu0 %v137
    %161 = vmatpush.msra.mxu0 %v136
    %162 = vmatpush.msra.mxu0 %v135
    %163 = vmatmul.f32.gmra.mxu0 %v145
    %v164 = vpop.f32.mrf.mxu0
    %v165 = vadd.f32 %v141, %v164
    %166 = vdwg.mxu0
    %v167 = vmul.f32 %v165, %v165
    %v168 = vld [vmem:[#allocation9] sm:$0xff]
    %v169 = vld [vmem:[#allocation9 + $0x8] sm:$0xff]
    %v170 = vld [vmem:[#allocation9 + $0x10] sm:$0xff]
    %v171 = vld [vmem:[#allocation9 + $0x18] sm:$0xff]
    %v173 = vsel %vm143, %v167, 0
    %175 = vmatpush.msra.mxu0 0.0
    %176 = vmatpush.msra.mxu0 0.0
    %177 = vmatpush.msra.mxu0 0.0
    %178 = vmatpush.msra.mxu0 0.0
    %179 = vmatpush.msra.mxu0 0.0
    %180 = vmatpush.msra.mxu0 0.0
    %181 = vmatpush.msra.mxu0 0.0
    %182 = vmatpush.msra.mxu0 0.0
    %183 = vmatpush.msra.mxu0 0.0
    %184 = vmatpush.msra.mxu0 0.0
    %185 = vmatpush.msra.mxu0 0.0
    %186 = vmatpush.msra.mxu0 0.0
    %187 = vmatpush.msra.mxu0 %v171
    %188 = vmatpush.msra.mxu0 %v170
    %189 = vmatpush.msra.mxu0 %v169
    %190 = vmatpush.msra.mxu0 %v168
    %191 = vmatmul.f32.gmra.mxu0 %v173
    %v192 = vpop.f32.mrf.mxu0
    %v193 = vadd.f32 1e-08, %v192
    %194 = vdwg.mxu0
    %v195 = vrsqrt.pop %v193
    %v196 = vmul.f32 %v195, %v193
    %v197 = vmul.f32 %v196, %v195
    %v198 = vmul.f32 0.5, %v197
    %v199 = vsub.f32 1.5, %v198
    %v200 = vmul.f32 %v195, %v199
    %vm201 = vweird.f32 %v193
    %vm202 = vweird.f32 %v195
    %vm203 = vmor %vm201, %vm202
    %v204 = vsel %vm203, %v195, %v200
    %v205 = vld [vmem:[#allocation12] sm:$0xff]
    %v206 = vld [vmem:[#allocation12 + $0x8] sm:$0xff]
    %v207 = vld [vmem:[#allocation12 + $0x10] sm:$0xff]
    %v208 = vld [vmem:[#allocation12 + $0x18] sm:$0xff]
    %209 = vrot.lane.b32.xlu0 %v167, 96
    %v210 = vpop.permute.xlu0 %209
    %v211 = vsel %vm143, %v210, 0
    %213 = vmatpush.msra.mxu0 0.0
    %214 = vmatpush.msra.mxu0 0.0
    %215 = vmatpush.msra.mxu0 0.0
    %216 = vmatpush.msra.mxu0 0.0
    %217 = vmatpush.msra.mxu0 0.0
    %218 = vmatpush.msra.mxu0 0.0
    %219 = vmatpush.msra.mxu0 0.0
    %220 = vmatpush.msra.mxu0 0.0
    %221 = vmatpush.msra.mxu0 0.0
    %222 = vmatpush.msra.mxu0 0.0
    %223 = vmatpush.msra.mxu0 0.0
    %224 = vmatpush.msra.mxu0 0.0
    %225 = vmatpush.msra.mxu0 %v208
    %226 = vmatpush.msra.mxu0 %v207
    %227 = vmatpush.msra.mxu0 %v206
    %228 = vmatpush.msra.mxu0 %v205
    %229 = vmatmul.f32.gmra.mxu0 %v211
    %v230 = vpop.f32.mrf.mxu0
    %v231 = vadd.f32 1e-08, %v230
    %232 = vdwg.mxu0
    %v233 = vrsqrt.pop %v231
    %v234 = vmul.f32 %v233, %v231
    %v235 = vmul.f32 %v234, %v233
    %v236 = vmul.f32 0.5, %v235
    %v237 = vsub.f32 1.5, %v236
    %v238 = vmul.f32 %v233, %v237
    %vm239 = vweird.f32 %v231
    %vm240 = vweird.f32 %v233
    %vm241 = vmor %vm239, %vm240
    %v242 = vsel %vm241, %v233, %v238
    %244 = vrot.lane.b32.xlu0 %v165, 32
    %v245 = vpop.permute.xlu0 %244
    %v247 = vsel %vm143, 0.35355338, 1.0
    %vm248 = vcmask 523264
    %v249 = vsel %vm248, %v247, %v245
    %v250 = vmul.f32 %v204, %v249
    %v251 = vrot.slane %v165, 1
    %v252 = vperm.slane %v165, 0
    %v253 = vperm.slane %v251, 0
    %v256 = vmul.f32 %v130, %v252
    %v257 = vmul.f32 %v131, %v252
    %v258 = vmul.f32 %v132, %v253
    %v259 = vmul.f32 %v133, %v253
    %v260 = vsel %vm143, %v256, 0.0
    %261 = vadd.xlane.f32.xlu0 %v260
    %v262 = vpop.xlane.xlu0 %261
    %v263 = vsel %vm143, %v257, 0.0
    %264 = vadd.xlane.f32.xlu0 %v263
    %v265 = vpop.xlane.xlu0 %264
    %v266 = vsel %vm143, %v258, 0.0
    %267 = vadd.xlane.f32.xlu0 %v266
    %v268 = vpop.xlane.xlu0 %267
    %v269 = vsel %vm143, %v259, 0.0
    %270 = vadd.xlane.f32.xlu0 %v269
    %v271 = vpop.xlane.xlu0 %270
    %v272 = vrcp.pop 32.0
    %v273 = vmul.f32 32.0, %v272
    %v274 = vsub.f32 1.0, %v273
    %v275 = vmul.f32 %v272, %v274
    %v276 = vadd.f32 %v272, %v275
    %vm277 = vweird.f32 %v272
    %v278 = vsel %vm277, %v272, %v276
    %v279 = vmul.f32 %v262, %v278
    %v280 = vmul.f32 %v265, %v278
    %v281 = vmul.f32 %v268, %v278
    %v282 = vmul.f32 %v271, %v278
    %v283 = vsub.f32 %v256, %v279
    %v284 = vsub.f32 %v257, %v280
    %v285 = vsub.f32 %v258, %v281
    %v286 = vsub.f32 %v259, %v282
    %v287 = vmul.f32 %v283, %v283
    %v288 = vmul.f32 %v284, %v284
    %v289 = vmul.f32 %v285, %v285
    %v290 = vmul.f32 %v286, %v286
    %v291 = vsel %vm143, %v287, 0.0
    %292 = vadd.xlane.f32.xlu0 %v291
    %v293 = vpop.xlane.xlu0 %292
    %v294 = vsel %vm143, %v288, 0.0
    %295 = vadd.xlane.f32.xlu0 %v294
    %v296 = vpop.xlane.xlu0 %295
    %v297 = vsel %vm143, %v289, 0.0
    %298 = vadd.xlane.f32.xlu0 %v297
    %v299 = vpop.xlane.xlu0 %298
    %v300 = vsel %vm143, %v290, 0.0
    %301 = vadd.xlane.f32.xlu0 %v300
    %v302 = vpop.xlane.xlu0 %301
    %v303 = vmul.f32 %v293, %v278
    %v304 = vmul.f32 %v296, %v278
    %v305 = vmul.f32 %v299, %v278
    %v306 = vmul.f32 %v302, %v278
    %v307 = vadd.f32 %v303, 1e-05
    %v308 = vadd.f32 %v304, 1e-05
    %v309 = vadd.f32 %v305, 1e-05
    %v310 = vadd.f32 %v306, 1e-05
    %v311 = vrsqrt.pop %v307
    %v312 = vmul.f32 %v311, %v307
    %v313 = vmul.f32 %v312, %v311
    %v314 = vmul.f32 0.5, %v313
    %v315 = vsub.f32 1.5, %v314
    %v316 = vmul.f32 %v311, %v315
    %vm317 = vweird.f32 %v307
    %vm318 = vweird.f32 %v311
    %vm319 = vmor %vm317, %vm318
    %v320 = vsel %vm319, %v311, %v316
    %v321 = vrsqrt.pop %v308
    %v322 = vmul.f32 %v321, %v308
    %v323 = vmul.f32 %v322, %v321
    %v324 = vmul.f32 0.5, %v323
    %v325 = vsub.f32 1.5, %v324
    %v326 = vmul.f32 %v321, %v325
    %vm327 = vweird.f32 %v308
    %vm328 = vweird.f32 %v321
    %vm329 = vmor %vm327, %vm328
    %v330 = vsel %vm329, %v321, %v326
    %v331 = vrsqrt.pop %v309
    %v332 = vmul.f32 %v331, %v309
    %v333 = vmul.f32 %v332, %v331
    %v334 = vmul.f32 0.5, %v333
    %v335 = vsub.f32 1.5, %v334
    %v336 = vmul.f32 %v331, %v335
    %vm337 = vweird.f32 %v309
    %vm338 = vweird.f32 %v331
    %vm339 = vmor %vm337, %vm338
    %v340 = vsel %vm339, %v331, %v336
    %v341 = vrsqrt.pop %v310
    %v342 = vmul.f32 %v341, %v310
    %v343 = vmul.f32 %v342, %v341
    %v344 = vmul.f32 0.5, %v343
    %v345 = vsub.f32 1.5, %v344
    %v346 = vmul.f32 %v341, %v345
    %vm347 = vweird.f32 %v310
    %vm348 = vweird.f32 %v341
    %vm349 = vmor %vm347, %vm348
    %v350 = vsel %vm349, %v341, %v346
    %v351 = vmul.f32 %v283, %v320
    %v352 = vmul.f32 %v284, %v330
    %v353 = vmul.f32 %v285, %v340
    %v354 = vmul.f32 %v286, %v350
    %v355 = vld [vmem:[#allocation8] sm:$0xff]
    %v356 = vld [vmem:[#allocation8 + $0x8] sm:$0xff]
    %v357 = vld [vmem:[#allocation8 + $0x10] sm:$0xff]
    %v358 = vld [vmem:[#allocation8 + $0x18] sm:$0xff]
    %v360 = vsel %vm143, %v351, 0
    %v363 = vsel %vm143, %v352, 0
    %v366 = vsel %vm143, %v353, 0
    %v369 = vsel %vm143, %v354, 0
    %371 = vmatpush.msra.mxu0 0.0
    %372 = vmatpush.msra.mxu0 0.0
    %373 = vmatpush.msra.mxu0 0.0
    %374 = vmatpush.msra.mxu0 0.0
    %375 = vmatpush.msra.mxu0 0.0
    %376 = vmatpush.msra.mxu0 0.0
    %377 = vmatpush.msra.mxu0 0.0
    %378 = vmatpush.msra.mxu0 0.0
    %379 = vmatpush.msra.mxu0 0.0
    %380 = vmatpush.msra.mxu0 0.0
    %381 = vmatpush.msra.mxu0 0.0
    %382 = vmatpush.msra.mxu0 0.0
    %383 = vmatpush.msra.mxu0 %v358
    %384 = vmatpush.msra.mxu0 %v357
    %385 = vmatpush.msra.mxu0 %v356
    %386 = vmatpush.msra.mxu0 %v355
    %387 = vmatmul.f32.gmra.mxu0 %v360
    %v388 = vpop.f32.mrf.mxu0
    %v389 = vadd.f32 0.0, %v388
    %390 = vmatmul.f32.gmra.mxu0 %v363
    %v391 = vpop.f32.mrf.mxu0
    %v392 = vadd.f32 0.0, %v391
    %393 = vmatmul.f32.gmra.mxu0 %v366
    %v394 = vpop.f32.mrf.mxu0
    %v395 = vadd.f32 0.0, %v394
    %396 = vmatmul.f32.gmra.mxu0 %v369
    %v397 = vpop.f32.mrf.mxu0
    %v398 = vadd.f32 0.0, %v397
    %399 = vdwg.mxu0
    %v401 = vrot.slane %v250, 1
    %v402 = vperm.slane %v250, 0
    %v403 = vperm.slane %v401, 0
    %v406 = vmul.f32 %v389, %v402
    %v407 = vmul.f32 %v392, %v402
    %v408 = vmul.f32 %v395, %v403
    %v409 = vmul.f32 %v398, %v403
    %412 = vrot.lane.b32.xlu0 %v406, 96
    %v413 = vpop.permute.xlu0 %412
    %414 = vrot.lane.b32.xlu0 %v407, 96
    %v415 = vpop.permute.xlu0 %414
    %vm416 = vcmask 64512
    %v417 = vsel %vm416, %v406, 0
    %v419 = vsel %vm416, %v407, 0
    %v421 = vsel %vm416, %v413, 0
    %v423 = vsel %vm416, %v415, 0
    %425 = vmatpush.xpose.msra.mxu0 0.0
    %426 = vmatpush.xpose.msra.mxu0 0.0
    %427 = vmatpush.xpose.msra.mxu0 0.0
    %428 = vmatpush.xpose.msra.mxu0 0.0
    %429 = vmatpush.xpose.msra.mxu0 0.0
    %430 = vmatpush.xpose.msra.mxu0 0.0
    %431 = vmatpush.xpose.msra.mxu0 0.0
    %432 = vmatpush.xpose.msra.mxu0 0.0
    %433 = vmatpush.xpose.msra.mxu0 0.0
    %434 = vmatpush.xpose.msra.mxu0 0.0
    %435 = vmatpush.xpose.msra.mxu0 0.0
    %436 = vmatpush.xpose.msra.mxu0 0.0
    %437 = vmatpush.xpose.msra.mxu0 0.0
    %438 = vmatpush.xpose.msra.mxu0 0.0
    %439 = vmatpush.xpose.msra.mxu0 %v423
    %440 = vmatpush.xpose.msra.mxu0 %v421
    %441 = vmatmul.f32.gmra.mxu0 %v417
    %v442 = vpop.f32.mrf.mxu0
    %v443 = vadd.f32 0.0, %v442
    %444 = vmatmul.f32.gmra.mxu0 %v419
    %v445 = vpop.f32.mrf.mxu0
    %v446 = vadd.f32 0.0, %v445
    %447 = vdwg.mxu0
    %vm448 = vcmask 130048
    %v449 = vsel %vm448, %v443, -inf
    %450 = vmax.xlane.f32.xlu0 %v449
    %v451 = vpop.xlane.xlu0 %450
    %v452 = vsel %vm448, %v446, -inf
    %453 = vmax.xlane.f32.xlu0 %v452
    %v454 = vpop.xlane.xlu0 %453
    %v455 = vsub.f32 %v443, %v451
    %v456 = vsub.f32 %v446, %v454
    %v457 = vmul.f32 %v455, 1.442695
    %v458 = vpow.pop %v457
    %v459 = vmul.f32 %v456, 1.442695
    %v460 = vpow.pop %v459
    %v461 = vsel %vm448, %v458, 0.0
    %462 = vadd.xlane.f32.xlu0 %v461
    %v463 = vpop.xlane.xlu0 %462
    %v464 = vsel %vm448, %v460, 0.0
    %465 = vadd.xlane.f32.xlu0 %v464
    %v466 = vpop.xlane.xlu0 %465
    %v467 = vrcp.pop %v463
    %v468 = vrcp.pop %v466
    %v469 = vmul.f32 %v458, %v467
    %v470 = vmul.f32 %v460, %v468
    %471 = vrot.lane.b32.xlu0 %v406, 64
    %v472 = vpop.permute.xlu0 %471
    %473 = vrot.lane.b32.xlu0 %v407, 64
    %v474 = vpop.permute.xlu0 %473
    %v478 = vsel %vm448, %v469, 0
    %v481 = vsel %vm448, %v470, 0
    %483 = vmatpush.msra.mxu0 0.0
    %484 = vmatpush.msra.mxu0 0.0
    %485 = vmatpush.msra.mxu0 0.0
    %486 = vmatpush.msra.mxu0 0.0
    %487 = vmatpush.msra.mxu0 0.0
    %488 = vmatpush.msra.mxu0 0.0
    %489 = vmatpush.msra.mxu0 0.0
    %490 = vmatpush.msra.mxu0 0.0
    %491 = vmatpush.msra.mxu0 0.0
    %492 = vmatpush.msra.mxu0 0.0
    %493 = vmatpush.msra.mxu0 0.0
    %494 = vmatpush.msra.mxu0 0.0
    %495 = vmatpush.msra.mxu0 0.0
    %496 = vmatpush.msra.mxu0 0.0
    %497 = vmatpush.msra.mxu0 %v474
    %498 = vmatpush.msra.mxu0 %v472
    %499 = vmatmul.f32.gmra.mxu0 %v478
    %v500 = vpop.f32.mrf.mxu0
    %v501 = vadd.f32 0.0, %v500
    %502 = vmatmul.f32.gmra.mxu0 %v481
    %v503 = vpop.f32.mrf.mxu0
    %v504 = vadd.f32 0.0, %v503
    %505 = vdwg.mxu0
    %506 = vst.msk [vmem:[#allocation2] sm:$0xff] %vm416, %v501
    %507 = vst.msk [vmem:[#allocation2 + $0x8] sm:$0xff] %vm416, %v504
    %508 = vrot.lane.b32.xlu0 %v406, 120
    %v509 = vpop.permute.xlu0 %508
    %510 = vrot.lane.b32.xlu0 %v407, 120
    %v511 = vpop.permute.xlu0 %510
    %512 = vrot.lane.b32.xlu0 %v406, 88
    %v513 = vpop.permute.xlu0 %512
    %514 = vrot.lane.b32.xlu0 %v407, 88
    %v515 = vpop.permute.xlu0 %514
    %v516 = vsel %vm416, %v509, 0
    %v518 = vsel %vm416, %v511, 0
    %v520 = vsel %vm416, %v513, 0
    %v522 = vsel %vm416, %v515, 0
    %524 = vmatpush.xpose.msra.mxu0 0.0
    %525 = vmatpush.xpose.msra.mxu0 0.0
    %526 = vmatpush.xpose.msra.mxu0 0.0
    %527 = vmatpush.xpose.msra.mxu0 0.0
    %528 = vmatpush.xpose.msra.mxu0 0.0
    %529 = vmatpush.xpose.msra.mxu0 0.0
    %530 = vmatpush.xpose.msra.mxu0 0.0
    %531 = vmatpush.xpose.msra.mxu0 0.0
    %532 = vmatpush.xpose.msra.mxu0 0.0
    %533 = vmatpush.xpose.msra.mxu0 0.0
    %534 = vmatpush.xpose.msra.mxu0 0.0
    %535 = vmatpush.xpose.msra.mxu0 0.0
    %536 = vmatpush.xpose.msra.mxu0 0.0
    %537 = vmatpush.xpose.msra.mxu0 0.0
    %538 = vmatpush.xpose.msra.mxu0 %v522
    %539 = vmatpush.xpose.msra.mxu0 %v520
    %540 = vmatmul.f32.gmra.mxu0 %v516
    %v541 = vpop.f32.mrf.mxu0
    %v542 = vadd.f32 0.0, %v541
    %543 = vmatmul.f32.gmra.mxu0 %v518
    %v544 = vpop.f32.mrf.mxu0
    %v545 = vadd.f32 0.0, %v544
    %546 = vdwg.mxu0
    %v547 = vsel %vm448, %v542, -inf
    %548 = vmax.xlane.f32.xlu0 %v547
    %v549 = vpop.xlane.xlu0 %548
    %v550 = vsel %vm448, %v545, -inf
    %551 = vmax.xlane.f32.xlu0 %v550
    %v552 = vpop.xlane.xlu0 %551
    %v553 = vsub.f32 %v542, %v549
    %v554 = vsub.f32 %v545, %v552
    %v555 = vmul.f32 %v553, 1.442695
    %v556 = vpow.pop %v555
    %v557 = vmul.f32 %v554, 1.442695
    %v558 = vpow.pop %v557
    %v559 = vsel %vm448, %v556, 0.0
    %560 = vadd.xlane.f32.xlu0 %v559
    %v561 = vpop.xlane.xlu0 %560
    %v562 = vsel %vm448, %v558, 0.0
    %563 = vadd.xlane.f32.xlu0 %v562
    %v564 = vpop.xlane.xlu0 %563
    %v565 = vrcp.pop %v561
    %v566 = vrcp.pop %v564
    %v567 = vmul.f32 %v556, %v565
    %v568 = vmul.f32 %v558, %v566
    %569 = vrot.lane.b32.xlu0 %v406, 56
    %v570 = vpop.permute.xlu0 %569
    %571 = vrot.lane.b32.xlu0 %v407, 56
    %v572 = vpop.permute.xlu0 %571
    %v576 = vsel %vm448, %v567, 0
    %v579 = vsel %vm448, %v568, 0
    %581 = vmatpush.msra.mxu0 0.0
    %582 = vmatpush.msra.mxu0 0.0
    %583 = vmatpush.msra.mxu0 0.0
    %584 = vmatpush.msra.mxu0 0.0
    %585 = vmatpush.msra.mxu0 0.0
    %586 = vmatpush.msra.mxu0 0.0
    %587 = vmatpush.msra.mxu0 0.0
    %588 = vmatpush.msra.mxu0 0.0
    %589 = vmatpush.msra.mxu0 0.0
    %590 = vmatpush.msra.mxu0 0.0
    %591 = vmatpush.msra.mxu0 0.0
    %592 = vmatpush.msra.mxu0 0.0
    %593 = vmatpush.msra.mxu0 0.0
    %594 = vmatpush.msra.mxu0 0.0
    %595 = vmatpush.msra.mxu0 %v572
    %596 = vmatpush.msra.mxu0 %v570
    %597 = vmatmul.f32.gmra.mxu0 %v576
    %v598 = vpop.f32.mrf.mxu0
    %v599 = vadd.f32 0.0, %v598
    %600 = vmatmul.f32.gmra.mxu0 %v579
    %v601 = vpop.f32.mrf.mxu0
    %v602 = vadd.f32 0.0, %v601
    %603 = vdwg.mxu0
    %606 = vrot.lane.b32.xlu0 %v599, 8
    %v607 = vpop.permute.xlu0 %606
    %608 = vrot.lane.b32.xlu0 %v602, 8
    %v609 = vpop.permute.xlu0 %608
    %vm612 = vcmask 130112
    %613 = vst.msk [vmem:[#allocation2] sm:$0xff] %vm612, %v607
    %614 = vst.msk [vmem:[#allocation2 + $0x8] sm:$0xff] %vm612, %v609
    %615 = vrot.lane.b32.xlu0 %v406, 112
    %v616 = vpop.permute.xlu0 %615
    %617 = vrot.lane.b32.xlu0 %v407, 112
    %v618 = vpop.permute.xlu0 %617
    %619 = vrot.lane.b32.xlu0 %v406, 80
    %v620 = vpop.permute.xlu0 %619
    %621 = vrot.lane.b32.xlu0 %v407, 80
    %v622 = vpop.permute.xlu0 %621
    %v623 = vsel %vm416, %v616, 0
    %v625 = vsel %vm416, %v618, 0
    %v627 = vsel %vm416, %v620, 0
    %v629 = vsel %vm416, %v622, 0
    %631 = vmatpush.xpose.msra.mxu0 0.0
    %632 = vmatpush.xpose.msra.mxu0 0.0
    %633 = vmatpush.xpose.msra.mxu0 0.0
    %634 = vmatpush.xpose.msra.mxu0 0.0
    %635 = vmatpush.xpose.msra.mxu0 0.0
    %636 = vmatpush.xpose.msra.mxu0 0.0
    %637 = vmatpush.xpose.msra.mxu0 0.0
    %638 = vmatpush.xpose.msra.mxu0 0.0
    %639 = vmatpush.xpose.msra.mxu0 0.0
    %640 = vmatpush.xpose.msra.mxu0 0.0
    %641 = vmatpush.xpose.msra.mxu0 0.0
    %642 = vmatpush.xpose.msra.mxu0 0.0
    %643 = vmatpush.xpose.msra.mxu0 0.0
    %644 = vmatpush.xpose.msra.mxu0 0.0
    %645 = vmatpush.xpose.msra.mxu0 %v629
    %646 = vmatpush.xpose.msra.mxu0 %v627
    %647 = vmatmul.f32.gmra.mxu0 %v623
    %v648 = vpop.f32.mrf.mxu0
    %v649 = vadd.f32 0.0, %v648
    %650 = vmatmul.f32.gmra.mxu0 %v625
    %v651 = vpop.f32.mrf.mxu0
    %v652 = vadd.f32 0.0, %v651
    %653 = vdwg.mxu0
    %v654 = vsel %vm448, %v649, -inf
    %655 = vmax.xlane.f32.xlu0 %v654
    %v656 = vpop.xlane.xlu0 %655
    %v657 = vsel %vm448, %v652, -inf
    %658 = vmax.xlane.f32.xlu0 %v657
    %v659 = vpop.xlane.xlu0 %658
    %v660 = vsub.f32 %v649, %v656
    %v661 = vsub.f32 %v652, %v659
    %v662 = vmul.f32 %v660, 1.442695
    %v663 = vpow.pop %v662
    %v664 = vmul.f32 %v661, 1.442695
    %v665 = vpow.pop %v664
    %v666 = vsel %vm448, %v663, 0.0
    %667 = vadd.xlane.f32.xlu0 %v666
    %v668 = vpop.xlane.xlu0 %667
    %v669 = vsel %vm448, %v665, 0.0
    %670 = vadd.xlane.f32.xlu0 %v669
    %v671 = vpop.xlane.xlu0 %670
    %v672 = vrcp.pop %v668
    %v673 = vrcp.pop %v671
    %v674 = vmul.f32 %v663, %v672
    %v675 = vmul.f32 %v665, %v673
    %676 = vrot.lane.b32.xlu0 %v406, 48
    %v677 = vpop.permute.xlu0 %676
    %678 = vrot.lane.b32.xlu0 %v407, 48
    %v679 = vpop.permute.xlu0 %678
    %v683 = vsel %vm448, %v674, 0
    %v686 = vsel %vm448, %v675, 0
    %688 = vmatpush.msra.mxu0 0.0
    %689 = vmatpush.msra.mxu0 0.0
    %690 = vmatpush.msra.mxu0 0.0
    %691 = vmatpush.msra.mxu0 0.0
    %692 = vmatpush.msra.mxu0 0.0
    %693 = vmatpush.msra.mxu0 0.0
    %694 = vmatpush.msra.mxu0 0.0
    %695 = vmatpush.msra.mxu0 0.0
    %696 = vmatpush.msra.mxu0 0.0
    %697 = vmatpush.msra.mxu0 0.0
    %698 = vmatpush.msra.mxu0 0.0
    %699 = vmatpush.msra.mxu0 0.0
    %700 = vmatpush.msra.mxu0 0.0
    %701 = vmatpush.msra.mxu0 0.0
    %702 = vmatpush.msra.mxu0 %v679
    %703 = vmatpush.msra.mxu0 %v677
    %704 = vmatmul.f32.gmra.mxu0 %v683
    %v705 = vpop.f32.mrf.mxu0
    %v706 = vadd.f32 0.0, %v705
    %707 = vmatmul.f32.gmra.mxu0 %v686
    %v708 = vpop.f32.mrf.mxu0
    %v709 = vadd.f32 0.0, %v708
    %710 = vdwg.mxu0
    %713 = vrot.lane.b32.xlu0 %v706, 16
    %v714 = vpop.permute.xlu0 %713
    %715 = vrot.lane.b32.xlu0 %v709, 16
    %v716 = vpop.permute.xlu0 %715
    %vm719 = vcmask 195712
    %720 = vst.msk [vmem:[#allocation2] sm:$0xff] %vm719, %v714
    %721 = vst.msk [vmem:[#allocation2 + $0x8] sm:$0xff] %vm719, %v716
    %722 = vrot.lane.b32.xlu0 %v406, 104
    %v723 = vpop.permute.xlu0 %722
    %724 = vrot.lane.b32.xlu0 %v407, 104
    %v725 = vpop.permute.xlu0 %724
    %726 = vrot.lane.b32.xlu0 %v406, 72
    %v727 = vpop.permute.xlu0 %726
    %728 = vrot.lane.b32.xlu0 %v407, 72
    %v729 = vpop.permute.xlu0 %728
    %v730 = vsel %vm416, %v723, 0
    %v732 = vsel %vm416, %v725, 0
    %v734 = vsel %vm416, %v727, 0
    %v736 = vsel %vm416, %v729, 0
    %738 = vmatpush.xpose.msra.mxu0 0.0
    %739 = vmatpush.xpose.msra.mxu0 0.0
    %740 = vmatpush.xpose.msra.mxu0 0.0
    %741 = vmatpush.xpose.msra.mxu0 0.0
    %742 = vmatpush.xpose.msra.mxu0 0.0
    %743 = vmatpush.xpose.msra.mxu0 0.0
    %744 = vmatpush.xpose.msra.mxu0 0.0
    %745 = vmatpush.xpose.msra.mxu0 0.0
    %746 = vmatpush.xpose.msra.mxu0 0.0
    %747 = vmatpush.xpose.msra.mxu0 0.0
    %748 = vmatpush.xpose.msra.mxu0 0.0
    %749 = vmatpush.xpose.msra.mxu0 0.0
    %750 = vmatpush.xpose.msra.mxu0 0.0
    %751 = vmatpush.xpose.msra.mxu0 0.0
    %752 = vmatpush.xpose.msra.mxu0 %v736
    %753 = vmatpush.xpose.msra.mxu0 %v734
    %754 = vmatmul.f32.gmra.mxu0 %v730
    %v755 = vpop.f32.mrf.mxu0
    %v756 = vadd.f32 0.0, %v755
    %757 = vmatmul.f32.gmra.mxu0 %v732
    %v758 = vpop.f32.mrf.mxu0
    %v759 = vadd.f32 0.0, %v758
    %760 = vdwg.mxu0
    %v761 = vsel %vm448, %v756, -inf
    %762 = vmax.xlane.f32.xlu0 %v761
    %v763 = vpop.xlane.xlu0 %762
    %v764 = vsel %vm448, %v759, -inf
    %765 = vmax.xlane.f32.xlu0 %v764
    %v766 = vpop.xlane.xlu0 %765
    %v767 = vsub.f32 %v756, %v763
    %v768 = vsub.f32 %v759, %v766
    %v769 = vmul.f32 %v767, 1.442695
    %v770 = vpow.pop %v769
    %v771 = vmul.f32 %v768, 1.442695
    %v772 = vpow.pop %v771
    %v773 = vsel %vm448, %v770, 0.0
    %774 = vadd.xlane.f32.xlu0 %v773
    %v775 = vpop.xlane.xlu0 %774
    %v776 = vsel %vm448, %v772, 0.0
    %777 = vadd.xlane.f32.xlu0 %v776
    %v778 = vpop.xlane.xlu0 %777
    %v779 = vrcp.pop %v775
    %v780 = vrcp.pop %v778
    %v781 = vmul.f32 %v770, %v779
    %v782 = vmul.f32 %v772, %v780
    %783 = vrot.lane.b32.xlu0 %v406, 40
    %v784 = vpop.permute.xlu0 %783
    %785 = vrot.lane.b32.xlu0 %v407, 40
    %v786 = vpop.permute.xlu0 %785
    %v790 = vsel %vm448, %v781, 0
    %v793 = vsel %vm448, %v782, 0
    %795 = vmatpush.msra.mxu0 0.0
    %796 = vmatpush.msra.mxu0 0.0
    %797 = vmatpush.msra.mxu0 0.0
    %798 = vmatpush.msra.mxu0 0.0
    %799 = vmatpush.msra.mxu0 0.0
    %800 = vmatpush.msra.mxu0 0.0
    %801 = vmatpush.msra.mxu0 0.0
    %802 = vmatpush.msra.mxu0 0.0
    %803 = vmatpush.msra.mxu0 0.0
    %804 = vmatpush.msra.mxu0 0.0
    %805 = vmatpush.msra.mxu0 0.0
    %806 = vmatpush.msra.mxu0 0.0
    %807 = vmatpush.msra.mxu0 0.0
    %808 = vmatpush.msra.mxu0 0.0
    %809 = vmatpush.msra.mxu0 %v786
    %810 = vmatpush.msra.mxu0 %v784
    %811 = vmatmul.f32.gmra.mxu0 %v790
    %v812 = vpop.f32.mrf.mxu0
    %v813 = vadd.f32 0.0, %v812
    %814 = vmatmul.f32.gmra.mxu0 %v793
    %v815 = vpop.f32.mrf.mxu0
    %v816 = vadd.f32 0.0, %v815
    %817 = vdwg.mxu0
    %820 = vrot.lane.b32.xlu0 %v813, 24
    %v821 = vpop.permute.xlu0 %820
    %822 = vrot.lane.b32.xlu0 %v816, 24
    %v823 = vpop.permute.xlu0 %822
    %vm826 = vcmask 261312
    %827 = vst.msk [vmem:[#allocation2] sm:$0xff] %vm826, %v821
    %828 = vst.msk [vmem:[#allocation2 + $0x8] sm:$0xff] %vm826, %v823
    %831 = vrot.lane.b32.xlu0 %v408, 96
    %v832 = vpop.permute.xlu0 %831
    %833 = vrot.lane.b32.xlu0 %v409, 96
    %v834 = vpop.permute.xlu0 %833
    %v835 = vsel %vm416, %v408, 0
    %v837 = vsel %vm416, %v409, 0
    %v839 = vsel %vm416, %v832, 0
    %v841 = vsel %vm416, %v834, 0
    %843 = vmatpush.xpose.msra.mxu0 0.0
    %844 = vmatpush.xpose.msra.mxu0 0.0
    %845 = vmatpush.xpose.msra.mxu0 0.0
    %846 = vmatpush.xpose.msra.mxu0 0.0
    %847 = vmatpush.xpose.msra.mxu0 0.0
    %848 = vmatpush.xpose.msra.mxu0 0.0
    %849 = vmatpush.xpose.msra.mxu0 0.0
    %850 = vmatpush.xpose.msra.mxu0 0.0
    %851 = vmatpush.xpose.msra.mxu0 0.0
    %852 = vmatpush.xpose.msra.mxu0 0.0
    %853 = vmatpush.xpose.msra.mxu0 0.0
    %854 = vmatpush.xpose.msra.mxu0 0.0
    %855 = vmatpush.xpose.msra.mxu0 0.0
    %856 = vmatpush.xpose.msra.mxu0 0.0
    %857 = vmatpush.xpose.msra.mxu0 %v841
    %858 = vmatpush.xpose.msra.mxu0 %v839
    %859 = vmatmul.f32.gmra.mxu0 %v835
    %v860 = vpop.f32.mrf.mxu0
    %v861 = vadd.f32 0.0, %v860
    %862 = vmatmul.f32.gmra.mxu0 %v837
    %v863 = vpop.f32.mrf.mxu0
    %v864 = vadd.f32 0.0, %v863
    %865 = vdwg.mxu0
    %v866 = vsel %vm448, %v861, -inf
    %867 = vmax.xlane.f32.xlu0 %v866
    %v868 = vpop.xlane.xlu0 %867
    %v869 = vsel %vm448, %v864, -inf
    %870 = vmax.xlane.f32.xlu0 %v869
    %v871 = vpop.xlane.xlu0 %870
    %v872 = vsub.f32 %v861, %v868
    %v873 = vsub.f32 %v864, %v871
    %v874 = vmul.f32 %v872, 1.442695
    %v875 = vpow.pop %v874
    %v876 = vmul.f32 %v873, 1.442695
    %v877 = vpow.pop %v876
    %v878 = vsel %vm448, %v875, 0.0
    %879 = vadd.xlane.f32.xlu0 %v878
    %v880 = vpop.xlane.xlu0 %879
    %v881 = vsel %vm448, %v877, 0.0
    %882 = vadd.xlane.f32.xlu0 %v881
    %v883 = vpop.xlane.xlu0 %882
    %v884 = vrcp.pop %v880
    %v885 = vrcp.pop %v883
    %v886 = vmul.f32 %v875, %v884
    %v887 = vmul.f32 %v877, %v885
    %888 = vrot.lane.b32.xlu0 %v408, 64
    %v889 = vpop.permute.xlu0 %888
    %890 = vrot.lane.b32.xlu0 %v409, 64
    %v891 = vpop.permute.xlu0 %890
    %v895 = vsel %vm448, %v886, 0
    %v898 = vsel %vm448, %v887, 0
    %900 = vmatpush.msra.mxu0 0.0
    %901 = vmatpush.msra.mxu0 0.0
    %902 = vmatpush.msra.mxu0 0.0
    %903 = vmatpush.msra.mxu0 0.0
    %904 = vmatpush.msra.mxu0 0.0
    %905 = vmatpush.msra.mxu0 0.0
    %906 = vmatpush.msra.mxu0 0.0
    %907 = vmatpush.msra.mxu0 0.0
    %908 = vmatpush.msra.mxu0 0.0
    %909 = vmatpush.msra.mxu0 0.0
    %910 = vmatpush.msra.mxu0 0.0
    %911 = vmatpush.msra.mxu0 0.0
    %912 = vmatpush.msra.mxu0 0.0
    %913 = vmatpush.msra.mxu0 0.0
    %914 = vmatpush.msra.mxu0 %v891
    %915 = vmatpush.msra.mxu0 %v889
    %916 = vmatmul.f32.gmra.mxu0 %v895
    %v917 = vpop.f32.mrf.mxu0
    %v918 = vadd.f32 0.0, %v917
    %919 = vmatmul.f32.gmra.mxu0 %v898
    %v920 = vpop.f32.mrf.mxu0
    %v921 = vadd.f32 0.0, %v920
    %922 = vdwg.mxu0
    %s923 = scalar_lea.vmem [#allocation2], 16
    %924 = vst.msk [vmem:[%s923] sm:$0xff] %vm416, %v918
    %925 = vst.msk [vmem:[%s923 + $0x8] sm:$0xff] %vm416, %v921
    %926 = vrot.lane.b32.xlu0 %v408, 120
    %v927 = vpop.permute.xlu0 %926
    %928 = vrot.lane.b32.xlu0 %v409, 120
    %v929 = vpop.permute.xlu0 %928
    %930 = vrot.lane.b32.xlu0 %v408, 88
    %v931 = vpop.permute.xlu0 %930
    %932 = vrot.lane.b32.xlu0 %v409, 88
    %v933 = vpop.permute.xlu0 %932
    %v934 = vsel %vm416, %v927, 0
    %v936 = vsel %vm416, %v929, 0
    %v938 = vsel %vm416, %v931, 0
    %v940 = vsel %vm416, %v933, 0
    %942 = vmatpush.xpose.msra.mxu0 0.0
    %943 = vmatpush.xpose.msra.mxu0 0.0
    %944 = vmatpush.xpose.msra.mxu0 0.0
    %945 = vmatpush.xpose.msra.mxu0 0.0
    %946 = vmatpush.xpose.msra.mxu0 0.0
    %947 = vmatpush.xpose.msra.mxu0 0.0
    %948 = vmatpush.xpose.msra.mxu0 0.0
    %949 = vmatpush.xpose.msra.mxu0 0.0
    %950 = vmatpush.xpose.msra.mxu0 0.0
    %951 = vmatpush.xpose.msra.mxu0 0.0
    %952 = vmatpush.xpose.msra.mxu0 0.0
    %953 = vmatpush.xpose.msra.mxu0 0.0
    %954 = vmatpush.xpose.msra.mxu0 0.0
    %955 = vmatpush.xpose.msra.mxu0 0.0
    %956 = vmatpush.xpose.msra.mxu0 %v940
    %957 = vmatpush.xpose.msra.mxu0 %v938
    %958 = vmatmul.f32.gmra.mxu0 %v934
    %v959 = vpop.f32.mrf.mxu0
    %v960 = vadd.f32 0.0, %v959
    %961 = vmatmul.f32.gmra.mxu0 %v936
    %v962 = vpop.f32.mrf.mxu0
    %v963 = vadd.f32 0.0, %v962
    %964 = vdwg.mxu0
    %v965 = vsel %vm448, %v960, -inf
    %966 = vmax.xlane.f32.xlu0 %v965
    %v967 = vpop.xlane.xlu0 %966
    %v968 = vsel %vm448, %v963, -inf
    %969 = vmax.xlane.f32.xlu0 %v968
    %v970 = vpop.xlane.xlu0 %969
    %v971 = vsub.f32 %v960, %v967
    %v972 = vsub.f32 %v963, %v970
    %v973 = vmul.f32 %v971, 1.442695
    %v974 = vpow.pop %v973
    %v975 = vmul.f32 %v972, 1.442695
    %v976 = vpow.pop %v975
    %v977 = vsel %vm448, %v974, 0.0
    %978 = vadd.xlane.f32.xlu0 %v977
    %v979 = vpop.xlane.xlu0 %978
    %v980 = vsel %vm448, %v976, 0.0
    %981 = vadd.xlane.f32.xlu0 %v980
    %v982 = vpop.xlane.xlu0 %981
    %v983 = vrcp.pop %v979
    %v984 = vrcp.pop %v982
    %v985 = vmul.f32 %v974, %v983
    %v986 = vmul.f32 %v976, %v984
    %987 = vrot.lane.b32.xlu0 %v408, 56
    %v988 = vpop.permute.xlu0 %987
    %989 = vrot.lane.b32.xlu0 %v409, 56
    %v990 = vpop.permute.xlu0 %989
    %v994 = vsel %vm448, %v985, 0
    %v997 = vsel %vm448, %v986, 0
    %999 = vmatpush.msra.mxu0 0.0
    %1000 = vmatpush.msra.mxu0 0.0
    %1001 = vmatpush.msra.mxu0 0.0
    %1002 = vmatpush.msra.mxu0 0.0
    %1003 = vmatpush.msra.mxu0 0.0
    %1004 = vmatpush.msra.mxu0 0.0
    %1005 = vmatpush.msra.mxu0 0.0
    %1006 = vmatpush.msra.mxu0 0.0
    %1007 = vmatpush.msra.mxu0 0.0
    %1008 = vmatpush.msra.mxu0 0.0
    %1009 = vmatpush.msra.mxu0 0.0
    %1010 = vmatpush.msra.mxu0 0.0
    %1011 = vmatpush.msra.mxu0 0.0
    %1012 = vmatpush.msra.mxu0 0.0
    %1013 = vmatpush.msra.mxu0 %v990
    %1014 = vmatpush.msra.mxu0 %v988
    %1015 = vmatmul.f32.gmra.mxu0 %v994
    %v1016 = vpop.f32.mrf.mxu0
    %v1017 = vadd.f32 0.0, %v1016
    %1018 = vmatmul.f32.gmra.mxu0 %v997
    %v1019 = vpop.f32.mrf.mxu0
    %v1020 = vadd.f32 0.0, %v1019
    %1021 = vdwg.mxu0
    %1024 = vrot.lane.b32.xlu0 %v1017, 8
    %v1025 = vpop.permute.xlu0 %1024
    %1026 = vrot.lane.b32.xlu0 %v1020, 8
    %v1027 = vpop.permute.xlu0 %1026
    %1030 = vst.msk [vmem:[%s923] sm:$0xff] %vm612, %v1025
    %1031 = vst.msk [vmem:[%s923 + $0x8] sm:$0xff] %vm612, %v1027
    %1032 = vrot.lane.b32.xlu0 %v408, 112
    %v1033 = vpop.permute.xlu0 %1032
    %1034 = vrot.lane.b32.xlu0 %v409, 112
    %v1035 = vpop.permute.xlu0 %1034
    %1036 = vrot.lane.b32.xlu0 %v408, 80
    %v1037 = vpop.permute.xlu0 %1036
    %1038 = vrot.lane.b32.xlu0 %v409, 80
    %v1039 = vpop.permute.xlu0 %1038
    %v1040 = vsel %vm416, %v1033, 0
    %v1042 = vsel %vm416, %v1035, 0
    %v1044 = vsel %vm416, %v1037, 0
    %v1046 = vsel %vm416, %v1039, 0
    %1048 = vmatpush.xpose.msra.mxu0 0.0
    %1049 = vmatpush.xpose.msra.mxu0 0.0
    %1050 = vmatpush.xpose.msra.mxu0 0.0
    %1051 = vmatpush.xpose.msra.mxu0 0.0
    %1052 = vmatpush.xpose.msra.mxu0 0.0
    %1053 = vmatpush.xpose.msra.mxu0 0.0
    %1054 = vmatpush.xpose.msra.mxu0 0.0
    %1055 = vmatpush.xpose.msra.mxu0 0.0
    %1056 = vmatpush.xpose.msra.mxu0 0.0
    %1057 = vmatpush.xpose.msra.mxu0 0.0
    %1058 = vmatpush.xpose.msra.mxu0 0.0
    %1059 = vmatpush.xpose.msra.mxu0 0.0
    %1060 = vmatpush.xpose.msra.mxu0 0.0
    %1061 = vmatpush.xpose.msra.mxu0 0.0
    %1062 = vmatpush.xpose.msra.mxu0 %v1046
    %1063 = vmatpush.xpose.msra.mxu0 %v1044
    %1064 = vmatmul.f32.gmra.mxu0 %v1040
    %v1065 = vpop.f32.mrf.mxu0
    %v1066 = vadd.f32 0.0, %v1065
    %1067 = vmatmul.f32.gmra.mxu0 %v1042
    %v1068 = vpop.f32.mrf.mxu0
    %v1069 = vadd.f32 0.0, %v1068
    %1070 = vdwg.mxu0
    %v1071 = vsel %vm448, %v1066, -inf
    %1072 = vmax.xlane.f32.xlu0 %v1071
    %v1073 = vpop.xlane.xlu0 %1072
    %v1074 = vsel %vm448, %v1069, -inf
    %1075 = vmax.xlane.f32.xlu0 %v1074
    %v1076 = vpop.xlane.xlu0 %1075
    %v1077 = vsub.f32 %v1066, %v1073
    %v1078 = vsub.f32 %v1069, %v1076
    %v1079 = vmul.f32 %v1077, 1.442695
    %v1080 = vpow.pop %v1079
    %v1081 = vmul.f32 %v1078, 1.442695
    %v1082 = vpow.pop %v1081
    %v1083 = vsel %vm448, %v1080, 0.0
    %1084 = vadd.xlane.f32.xlu0 %v1083
    %v1085 = vpop.xlane.xlu0 %1084
    %v1086 = vsel %vm448, %v1082, 0.0
    %1087 = vadd.xlane.f32.xlu0 %v1086
    %v1088 = vpop.xlane.xlu0 %1087
    %v1089 = vrcp.pop %v1085
    %v1090 = vrcp.pop %v1088
    %v1091 = vmul.f32 %v1080, %v1089
    %v1092 = vmul.f32 %v1082, %v1090
    %1093 = vrot.lane.b32.xlu0 %v408, 48
    %v1094 = vpop.permute.xlu0 %1093
    %1095 = vrot.lane.b32.xlu0 %v409, 48
    %v1096 = vpop.permute.xlu0 %1095
    %v1100 = vsel %vm448, %v1091, 0
    %v1103 = vsel %vm448, %v1092, 0
    %1105 = vmatpush.msra.mxu0 0.0
    %1106 = vmatpush.msra.mxu0 0.0
    %1107 = vmatpush.msra.mxu0 0.0
    %1108 = vmatpush.msra.mxu0 0.0
    %1109 = vmatpush.msra.mxu0 0.0
    %1110 = vmatpush.msra.mxu0 0.0
    %1111 = vmatpush.msra.mxu0 0.0
    %1112 = vmatpush.msra.mxu0 0.0
    %1113 = vmatpush.msra.mxu0 0.0
    %1114 = vmatpush.msra.mxu0 0.0
    %1115 = vmatpush.msra.mxu0 0.0
    %1116 = vmatpush.msra.mxu0 0.0
    %1117 = vmatpush.msra.mxu0 0.0
    %1118 = vmatpush.msra.mxu0 0.0
    %1119 = vmatpush.msra.mxu0 %v1096
    %1120 = vmatpush.msra.mxu0 %v1094
    %1121 = vmatmul.f32.gmra.mxu0 %v1100
    %v1122 = vpop.f32.mrf.mxu0
    %v1123 = vadd.f32 0.0, %v1122
    %1124 = vmatmul.f32.gmra.mxu0 %v1103
    %v1125 = vpop.f32.mrf.mxu0
    %v1126 = vadd.f32 0.0, %v1125
    %1127 = vdwg.mxu0
    %1130 = vrot.lane.b32.xlu0 %v1123, 16
    %v1131 = vpop.permute.xlu0 %1130
    %1132 = vrot.lane.b32.xlu0 %v1126, 16
    %v1133 = vpop.permute.xlu0 %1132
    %1136 = vst.msk [vmem:[%s923] sm:$0xff] %vm719, %v1131
    %1137 = vst.msk [vmem:[%s923 + $0x8] sm:$0xff] %vm719, %v1133
    %1138 = vrot.lane.b32.xlu0 %v408, 104
    %v1139 = vpop.permute.xlu0 %1138
    %1140 = vrot.lane.b32.xlu0 %v409, 104
    %v1141 = vpop.permute.xlu0 %1140
    %1142 = vrot.lane.b32.xlu0 %v408, 72
    %v1143 = vpop.permute.xlu0 %1142
    %1144 = vrot.lane.b32.xlu0 %v409, 72
    %v1145 = vpop.permute.xlu0 %1144
    %v1146 = vsel %vm416, %v1139, 0
    %v1148 = vsel %vm416, %v1141, 0
    %v1150 = vsel %vm416, %v1143, 0
    %v1152 = vsel %vm416, %v1145, 0
    %1154 = vmatpush.xpose.msra.mxu0 0.0
    %1155 = vmatpush.xpose.msra.mxu0 0.0
    %1156 = vmatpush.xpose.msra.mxu0 0.0
    %1157 = vmatpush.xpose.msra.mxu0 0.0
    %1158 = vmatpush.xpose.msra.mxu0 0.0
    %1159 = vmatpush.xpose.msra.mxu0 0.0
    %1160 = vmatpush.xpose.msra.mxu0 0.0
    %1161 = vmatpush.xpose.msra.mxu0 0.0
    %1162 = vmatpush.xpose.msra.mxu0 0.0
    %1163 = vmatpush.xpose.msra.mxu0 0.0
    %1164 = vmatpush.xpose.msra.mxu0 0.0
    %1165 = vmatpush.xpose.msra.mxu0 0.0
    %1166 = vmatpush.xpose.msra.mxu0 0.0
    %1167 = vmatpush.xpose.msra.mxu0 0.0
    %1168 = vmatpush.xpose.msra.mxu0 %v1152
    %1169 = vmatpush.xpose.msra.mxu0 %v1150
    %1170 = vmatmul.f32.gmra.mxu0 %v1146
    %v1171 = vpop.f32.mrf.mxu0
    %v1172 = vadd.f32 0.0, %v1171
    %1173 = vmatmul.f32.gmra.mxu0 %v1148
    %v1174 = vpop.f32.mrf.mxu0
    %v1175 = vadd.f32 0.0, %v1174
    %1176 = vdwg.mxu0
    %v1177 = vsel %vm448, %v1172, -inf
    %1178 = vmax.xlane.f32.xlu0 %v1177
    %v1179 = vpop.xlane.xlu0 %1178
    %v1180 = vsel %vm448, %v1175, -inf
    %1181 = vmax.xlane.f32.xlu0 %v1180
    %v1182 = vpop.xlane.xlu0 %1181
    %v1183 = vsub.f32 %v1172, %v1179
    %v1184 = vsub.f32 %v1175, %v1182
    %v1185 = vmul.f32 %v1183, 1.442695
    %v1186 = vpow.pop %v1185
    %v1187 = vmul.f32 %v1184, 1.442695
    %v1188 = vpow.pop %v1187
    %v1189 = vsel %vm448, %v1186, 0.0
    %1190 = vadd.xlane.f32.xlu0 %v1189
    %v1191 = vpop.xlane.xlu0 %1190
    %v1192 = vsel %vm448, %v1188, 0.0
    %1193 = vadd.xlane.f32.xlu0 %v1192
    %v1194 = vpop.xlane.xlu0 %1193
    %v1195 = vrcp.pop %v1191
    %v1196 = vrcp.pop %v1194
    %v1197 = vmul.f32 %v1186, %v1195
    %v1198 = vmul.f32 %v1188, %v1196
    %1199 = vrot.lane.b32.xlu0 %v408, 40
    %v1200 = vpop.permute.xlu0 %1199
    %1201 = vrot.lane.b32.xlu0 %v409, 40
    %v1202 = vpop.permute.xlu0 %1201
    %v1206 = vsel %vm448, %v1197, 0
    %v1209 = vsel %vm448, %v1198, 0
    %1211 = vmatpush.msra.mxu0 0.0
    %1212 = vmatpush.msra.mxu0 0.0
    %1213 = vmatpush.msra.mxu0 0.0
    %1214 = vmatpush.msra.mxu0 0.0
    %1215 = vmatpush.msra.mxu0 0.0
    %1216 = vmatpush.msra.mxu0 0.0
    %1217 = vmatpush.msra.mxu0 0.0
    %1218 = vmatpush.msra.mxu0 0.0
    %1219 = vmatpush.msra.mxu0 0.0
    %1220 = vmatpush.msra.mxu0 0.0
    %1221 = vmatpush.msra.mxu0 0.0
    %1222 = vmatpush.msra.mxu0 0.0
    %1223 = vmatpush.msra.mxu0 0.0
    %1224 = vmatpush.msra.mxu0 0.0
    %1225 = vmatpush.msra.mxu0 %v1202
    %1226 = vmatpush.msra.mxu0 %v1200
    %1227 = vmatmul.f32.gmra.mxu0 %v1206
    %v1228 = vpop.f32.mrf.mxu0
    %v1229 = vadd.f32 0.0, %v1228
    %1230 = vmatmul.f32.gmra.mxu0 %v1209
    %v1231 = vpop.f32.mrf.mxu0
    %v1232 = vadd.f32 0.0, %v1231
    %1233 = vdwg.mxu0
    %1236 = vrot.lane.b32.xlu0 %v1229, 24
    %v1237 = vpop.permute.xlu0 %1236
    %1238 = vrot.lane.b32.xlu0 %v1232, 24
    %v1239 = vpop.permute.xlu0 %1238
    %1242 = vst.msk [vmem:[%s923] sm:$0xff] %vm826, %v1237
    %1243 = vst.msk [vmem:[%s923 + $0x8] sm:$0xff] %vm826, %v1239
    %v1244 = vld [vmem:[#allocation2] sm:$0xff]
    %v1245 = vld [vmem:[#allocation2 + $0x8] sm:$0xff]
    %v1246 = vld [vmem:[#allocation2 + $0x10] sm:$0xff]
    %v1247 = vld [vmem:[#allocation2 + $0x18] sm:$0xff]
    %v1248 = vld [vmem:[#allocation11] sm:$0xff]
    %v1249 = vld [vmem:[#allocation11 + $0x8] sm:$0xff]
    %v1250 = vld [vmem:[#allocation11 + $0x10] sm:$0xff]
    %v1251 = vld [vmem:[#allocation11 + $0x18] sm:$0xff]
    %v1253 = vsel %vm143, %v1244, 0
    %v1256 = vsel %vm143, %v1245, 0
    %v1259 = vsel %vm143, %v1246, 0
    %v1262 = vsel %vm143, %v1247, 0
    %v1264 = vsel %vm143, %v472, 0
    %v1266 = vsel %vm143, %v474, 0
    %v1268 = vsel %vm143, %v889, 0
    %v1270 = vsel %vm143, %v891, 0
    %1272 = vmatpush.msra.mxu0 0.0
    %1273 = vmatpush.msra.mxu0 0.0
    %1274 = vmatpush.msra.mxu0 0.0
    %1275 = vmatpush.msra.mxu0 0.0
    %1276 = vmatpush.msra.mxu0 0.0
    %1277 = vmatpush.msra.mxu0 0.0
    %1278 = vmatpush.msra.mxu0 0.0
    %1279 = vmatpush.msra.mxu0 0.0
    %1280 = vmatpush.msra.mxu0 0.0
    %1281 = vmatpush.msra.mxu0 0.0
    %1282 = vmatpush.msra.mxu0 0.0
    %1283 = vmatpush.msra.mxu0 0.0
    %1284 = vmatpush.msra.mxu0 %v1251
    %1285 = vmatpush.msra.mxu0 %v1250
    %1286 = vmatpush.msra.mxu0 %v1249
    %1287 = vmatpush.msra.mxu0 %v1248
    %1288 = vmatmul.f32.gmra.mxu0 %v1253
    %v1289 = vpop.f32.mrf.mxu0
    %v1290 = vadd.f32 0.0, %v1289
    %1291 = vmatmul.f32.gmra.mxu0 %v1256
    %v1292 = vpop.f32.mrf.mxu0
    %v1293 = vadd.f32 0.0, %v1292
    %1294 = vmatmul.f32.gmra.mxu0 %v1259
    %v1295 = vpop.f32.mrf.mxu0
    %v1296 = vadd.f32 0.0, %v1295
    %1297 = vmatmul.f32.gmra.mxu0 %v1262
    %v1298 = vpop.f32.mrf.mxu0
    %v1299 = vadd.f32 0.0, %v1298
    %1300 = vmatmul.f32.gmra.mxu0 %v1264
    %v1301 = vpop.f32.mrf.mxu0
    %v1302 = vadd.f32 0.0, %v1301
    %1303 = vmatmul.f32.gmra.mxu0 %v1266
    %v1304 = vpop.f32.mrf.mxu0
    %v1305 = vadd.f32 0.0, %v1304
    %1306 = vmatmul.f32.gmra.mxu0 %v1268
    %v1307 = vpop.f32.mrf.mxu0
    %v1308 = vadd.f32 0.0, %v1307
    %1309 = vmatmul.f32.gmra.mxu0 %v1270
    %v1310 = vpop.f32.mrf.mxu0
    %v1311 = vadd.f32 0.0, %v1310
    %1312 = vdwg.mxu0
    %v1314 = vrot.slane %v242, 1
    %v1315 = vperm.slane %v242, 0
    %v1316 = vperm.slane %v1314, 0
    %v1319 = vmul.f32 %v1290, %v1315
    %v1320 = vmul.f32 %v1293, %v1315
    %v1321 = vmul.f32 %v1296, %v1316
    %v1322 = vmul.f32 %v1299, %v1316
    %v1323 = vmul.f32 %v1302, %v1315
    %v1324 = vmul.f32 %v1305, %v1315
    %v1325 = vmul.f32 %v1308, %v1316
    %v1326 = vmul.f32 %v1311, %v1316
    %1331 = vrot.lane.b32.xlu0 %v1323, 96
    %v1332 = vpop.permute.xlu0 %1331
    %1333 = vrot.lane.b32.xlu0 %v1324, 96
    %v1334 = vpop.permute.xlu0 %1333
    %1335 = vrot.lane.b32.xlu0 %v1325, 96
    %v1336 = vpop.permute.xlu0 %1335
    %1337 = vrot.lane.b32.xlu0 %v1326, 96
    %v1338 = vpop.permute.xlu0 %1337
    %v1343 = vadd.f32 %v1319, %v1332
    %v1344 = vadd.f32 %v1320, %v1334
    %v1345 = vadd.f32 %v1321, %v1336
    %v1346 = vadd.f32 %v1322, %v1338
    %v1347 = vld [vmem:[%s8] sm:$0xff]
    %v1348 = vld [vmem:[%s8 + $0x8] sm:$0xff]
    %1350 = vset.pattern.permute.xlu0 0
    %1351 = vperm.xlu0 %1350, %v1347
    %v1352 = vpop.permute.xlu0 %1351
    %1355 = vset.pattern.permute.xlu0 0
    %1356 = vperm.xlu0 %1355, %v1348
    %v1357 = vpop.permute.xlu0 %1356
    %v1359 = vadd.f32 %v1343, %v1352
    %v1360 = vadd.f32 %v1344, %v1357
    %v1361 = vadd.f32 %v1345, %v1352
    %v1362 = vadd.f32 %v1346, %v1357
    %v1363 = vld [vmem:[%s9] sm:$0x1]
    %v1365 = vperm.slane %v1363, 0
    %v1367 = vadd.f32 %v1359, %v1365
    %v1368 = vadd.f32 %v1360, %v1365
    %v1369 = vadd.f32 %v1361, %v1365
    %v1370 = vadd.f32 %v1362, %v1365
    %vm1371 = vcmp.ge.f32.partialorder %v1367, 0.0
    %vm1372 = vcmp.ge.f32.partialorder %v1368, 0.0
    %vm1373 = vcmp.ge.f32.partialorder %v1369, 0.0
    %vm1374 = vcmp.ge.f32.partialorder %v1370, 0.0
    %v1375 = vmul.f32 %v1367, 0.2
    %v1376 = vmul.f32 %v1368, 0.2
    %v1377 = vmul.f32 %v1369, 0.2
    %v1378 = vmul.f32 %v1370, 0.2
    %v1379 = vsel %vm1371, %v1367, %v1375
    %v1380 = vsel %vm1372, %v1368, %v1376
    %v1381 = vsel %vm1373, %v1369, %v1377
    %v1382 = vsel %vm1374, %v1370, %v1378
    %v1383 = vmax.f32 %v1379, -256.0
    %v1384 = vmax.f32 %v1380, -256.0
    %v1385 = vmax.f32 %v1381, -256.0
    %v1386 = vmax.f32 %v1382, -256.0
    %v1387 = vmin.f32 %v1383, 256.0
    %v1388 = vmin.f32 %v1384, 256.0
    %v1389 = vmin.f32 %v1385, 256.0
    %v1390 = vmin.f32 %v1386, 256.0
    %1391 = vst.msk [vmem:[#allocation14] sm:$0xff] %vm143, %v1387
    %1392 = vst.msk [vmem:[#allocation14 + $0x8] sm:$0xff] %vm143, %v1388
    %1393 = vst.msk [vmem:[#allocation14 + $0x10] sm:$0xff] %vm143, %v1389
    %1394 = vst.msk [vmem:[#allocation14 + $0x18] sm:$0xff] %vm143, %v1390
    // Predicated region
    $region66: #{tpu_custom_call.1} parent=1 // pred_check
      _
    $region67: #{tpu_custom_call.1} parent=1 // pred_check_branch
      %1396 = sbr.rel (0) target = $region69
    $region68: #{tpu_custom_call.1} parent=1 // pred_region
      %1398 = vsyncadd [#allocation5], 0
      %s1399 = sshll.u32 [#allocation14], 4
      %s1400 = int_to_ptr.vmem [resolvable:$true] %s1399
      %s1401 = sshll.u32 %s10, 4
      %s1402 = int_to_ptr.hbm [resolvable:$true] %s1401
      %1407 = dma.vmem_to_hbm [thread:$0]  %s1400, 512, %s1402, [#allocation5], 128, 128, 8
    $region69: #{tpu_custom_call.1} parent=1 // pred_fallthru
      _
    // Predicated region
    $region70: #{tpu_custom_call.1} parent=1 // pred_check
      _
    $region71: #{tpu_custom_call.1} parent=1 // pred_check_branch
      %1409 = sbr.rel (0) target = $region73
    $region72: #{tpu_custom_call.1} parent=1 // pred_region
      %1411 = dma.done [#allocation5], 512
    $region73: #{tpu_custom_call.1} parent=1 // pred_fallthru
      _
    %1412 = vsyncpa [#allocation4], 1
    %1413 = vsyncpa [#allocation7], 1
    %1414 = vsyncpa [#allocation10], 1
    %1415 = vsyncpa [#allocation13], 1
    %1416 = vsyncpa [#allocation5], 1

</llo_original>
